<compile_context>
chip_gen: v7x
topology: tpu7x:2x2x1
jax: 0.10.0
libtpu: 0.0.40
codegen_flags: <defaults>
</compile_context>

<pallas_src>
import jax
import jax.numpy as jnp
from jax.experimental import pallas as pl
from jax.experimental.pallas import tpu as pltpu


def _gconv1_kernel(d_ref, e_ref, h_ref, wbd_ref, o_ref):
    """One grid step = one batch element, all T bond types.

    d_ref, e_ref : (T, N, N)     f32
    h_ref        : (T, N, M)     f32
    wbd_ref      : (T*M, T*M)    f32   block-diagonal weight (resident)
    o_ref        : (N, T*M)      f32   lane-dense output slab
    """
    T = d_ref.shape[0]

    slabs = []
    for t in range(T):                       # static unroll, T is tiny
        d = d_ref[t]                         # (N, N)
        e = e_ref[t]                         # (N, N)
        h = h_ref[t]                         # (N, M)
        t1 = jnp.dot(d, e, preferred_element_type=jnp.float32)   # D @ E
        t2 = jnp.dot(t1, d, preferred_element_type=jnp.float32)  # (D@E) @ D
        t3 = jnp.dot(t2, h, preferred_element_type=jnp.float32)  # ... @ H
        slabs.append(t3)                     # (N, M)

    slab = jnp.concatenate(slabs, axis=-1)   # (N, T*M) = (16, 128), lane-dense

    # One 128-wide MXU matmul against the block-diagonal weight; the extra
    # zero-block FLOPs are free (MXU is otherwise idle at these sizes).
    out = jnp.dot(slab, wbd_ref[...], preferred_element_type=jnp.float32)

    # act = ReLU (see TODO at top).
    o_ref[...] = jnp.maximum(out, 0.0).astype(o_ref.dtype)


def gconv1_forward(H, D, E, W):
    """H: (B, T, N, M); D, E: (B, T, N, N); W: (T, M, M) -> (B, T, N, M)."""
    B, T, N, M = H.shape
    TM = T * M

    # Block-diagonal weight: W_bd[s*M + m, t*M + d] = (s == t) * W[t, m, d].
    eye_T = jnp.eye(T, dtype=W.dtype)
    W_bd = jnp.einsum("st,tmd->smtd", eye_T, W).reshape(TM, TM)

    sq = pl.Squeezed()
    grid_spec = pltpu.PrefetchScalarGridSpec(
        num_scalar_prefetch=0,
        grid=(B,),
        in_specs=[
            pl.BlockSpec((sq, T, N, N), lambda b: (b, 0, 0, 0)),  # D
            pl.BlockSpec((sq, T, N, N), lambda b: (b, 0, 0, 0)),  # E
            pl.BlockSpec((sq, T, N, M), lambda b: (b, 0, 0, 0)),  # H
            pl.BlockSpec((TM, TM),      lambda b: (0, 0)),        # W_bd (resident)
        ],
        out_specs=pl.BlockSpec((sq, N, TM), lambda b: (b, 0, 0)),
    )

    out_slab = pl.pallas_call(
        _gconv1_kernel,
        out_shape=jax.ShapeDtypeStruct((B, N, TM), jnp.float32),
        grid_spec=grid_spec,
        compiler_params=pltpu.CompilerParams(
            dimension_semantics=("parallel",)),
    )(D, E, H, W_bd)

    # (B, N, T*M) -> (B, N, T, M) -> (B, T, N, M); slab column index = t*M + m.
    return out_slab.reshape(B, N, T, M).transpose(0, 2, 1, 3)


if __name__ == "__main__":
    B = 2            # batch
    T = 4            # bond_type
    N = 16           # number of atoms / graph nodes
    M = 32           # embed_dim   (T * M = 128, lane-dense)

    key = jax.random.PRNGKey(0)
    k_d, k_e, k_h, k_w = jax.random.split(key, 4)

    D = jax.random.normal(k_d, (B, T, N, N), dtype=jnp.float32)
    E = jax.random.normal(k_e, (B, T, N, N), dtype=jnp.float32)
    H = jax.random.normal(k_h, (B, T, N, M), dtype=jnp.float32)

    # xavier_normal_ for Weight of shape (T, M, M): std = sqrt(2 / (M + M))
    xavier_std = (2.0 / (M + M)) ** 0.5
    W = xavier_std * jax.random.normal(k_w, (T, M, M), dtype=jnp.float32)

    out = gconv1_forward(H, D, E, W)
    jax.block_until_ready(out)

    # Pure-JAX reference for sanity (also checks the wrapper-side re-layout).
    ref = jax.nn.relu(
        jnp.einsum("btij,btjk,btkl,btlm,tmd->btid", D, E, D, H, W))
    assert out.shape == (B, T, N, M)
    assert jnp.allclose(out, ref, atol=1e-4, rtol=1e-4)

    print("KERNEL_OK")
</pallas_src>

<mosaic_0001>
module attributes {stable_mosaic.version = 11 : i64} {
  func.func @_gconv1_kernel(%arg0: i32, %arg1: memref<1x4x16x16xf32, #tpu.memory_space<vmem>>, %arg2: memref<1x4x16x16xf32, #tpu.memory_space<vmem>>, %arg3: memref<1x4x16x32xf32, #tpu.memory_space<vmem>>, %arg4: memref<128x128xf32, #tpu.memory_space<vmem>>, %arg5: memref<1x16x128xf32, #tpu.memory_space<vmem>>) attributes {dimension_semantics = [#tpu.dimension_semantics<parallel>], iteration_bounds = array<i64: 2>, scalar_prefetch = 0 : i64, scratch_operands = 0 : i64, tpu.core_type = #tpu.core_type<tc>, window_params = [{transform_indices = @transform_0, window_bounds = array<i64: 1, 4, 16, 16>}, {transform_indices = @transform_1, window_bounds = array<i64: 1, 4, 16, 16>}, {transform_indices = @transform_2, window_bounds = array<i64: 1, 4, 16, 32>}, {pipeline_mode = #tpu.pipeline_mode<synchronous>, transform_indices = @transform_3, window_bounds = array<i64: 128, 128>}, {transform_indices = @transform_4, window_bounds = array<i64: 1, 16, 128>}]} {
    %c0 = arith.constant 0 : index
    %c0_0 = arith.constant 0 : index
    %c0_1 = arith.constant 0 : index
    %c0_2 = arith.constant 0 : index
    %0 = vector.load %arg1[%c0, %c0_0, %c0_1, %c0_2] : memref<1x4x16x16xf32, #tpu.memory_space<vmem>>, vector<1x1x16x16xf32>
    %1 = vector.shape_cast %0 : vector<1x1x16x16xf32> to vector<16x16xf32>
    %c0_3 = arith.constant 0 : index
    %c0_4 = arith.constant 0 : index
    %c0_5 = arith.constant 0 : index
    %c0_6 = arith.constant 0 : index
    %2 = vector.load %arg2[%c0_3, %c0_4, %c0_5, %c0_6] : memref<1x4x16x16xf32, #tpu.memory_space<vmem>>, vector<1x1x16x16xf32>
    %3 = vector.shape_cast %2 : vector<1x1x16x16xf32> to vector<16x16xf32>
    %c0_7 = arith.constant 0 : index
    %c0_8 = arith.constant 0 : index
    %c0_9 = arith.constant 0 : index
    %c0_10 = arith.constant 0 : index
    %4 = vector.load %arg3[%c0_7, %c0_8, %c0_9, %c0_10] : memref<1x4x16x32xf32, #tpu.memory_space<vmem>>, vector<1x1x16x32xf32>
    %5 = vector.shape_cast %4 : vector<1x1x16x32xf32> to vector<16x32xf32>
    %cst = arith.constant dense<0.000000e+00> : vector<16x16xf32>
    %6 = tpu.matmul %1, %3, %cst {dimension_numbers = #tpu.dot_dimension_numbers<[1], [0], [0], [1], [0, 0, 1, 1], [], []>} : vector<16x16xf32>, vector<16x16xf32>, vector<16x16xf32> -> vector<16x16xf32>
    %cst_11 = arith.constant dense<0.000000e+00> : vector<16x16xf32>
    %7 = tpu.matmul %6, %1, %cst_11 {dimension_numbers = #tpu.dot_dimension_numbers<[1], [0], [0], [1], [0, 0, 1, 1], [], []>} : vector<16x16xf32>, vector<16x16xf32>, vector<16x16xf32> -> vector<16x16xf32>
    %cst_12 = arith.constant dense<0.000000e+00> : vector<16x32xf32>
    %8 = tpu.matmul %7, %5, %cst_12 {dimension_numbers = #tpu.dot_dimension_numbers<[1], [0], [0], [1], [0, 0, 1, 1], [], []>} : vector<16x16xf32>, vector<16x32xf32>, vector<16x32xf32> -> vector<16x32xf32>
    %c0_13 = arith.constant 0 : index
    %c1 = arith.constant 1 : index
    %c0_14 = arith.constant 0 : index
    %c0_15 = arith.constant 0 : index
    %9 = vector.load %arg1[%c0_13, %c1, %c0_14, %c0_15] : memref<1x4x16x16xf32, #tpu.memory_space<vmem>>, vector<1x1x16x16xf32>
    %10 = vector.shape_cast %9 : vector<1x1x16x16xf32> to vector<16x16xf32>
    %c0_16 = arith.constant 0 : index
    %c1_17 = arith.constant 1 : index
    %c0_18 = arith.constant 0 : index
    %c0_19 = arith.constant 0 : index
    %11 = vector.load %arg2[%c0_16, %c1_17, %c0_18, %c0_19] : memref<1x4x16x16xf32, #tpu.memory_space<vmem>>, vector<1x1x16x16xf32>
    %12 = vector.shape_cast %11 : vector<1x1x16x16xf32> to vector<16x16xf32>
    %c0_20 = arith.constant 0 : index
    %c1_21 = arith.constant 1 : index
    %c0_22 = arith.constant 0 : index
    %c0_23 = arith.constant 0 : index
    %13 = vector.load %arg3[%c0_20, %c1_21, %c0_22, %c0_23] : memref<1x4x16x32xf32, #tpu.memory_space<vmem>>, vector<1x1x16x32xf32>
    %14 = vector.shape_cast %13 : vector<1x1x16x32xf32> to vector<16x32xf32>
    %cst_24 = arith.constant dense<0.000000e+00> : vector<16x16xf32>
    %15 = tpu.matmul %10, %12, %cst_24 {dimension_numbers = #tpu.dot_dimension_numbers<[1], [0], [0], [1], [0, 0, 1, 1], [], []>} : vector<16x16xf32>, vector<16x16xf32>, vector<16x16xf32> -> vector<16x16xf32>
    %cst_25 = arith.constant dense<0.000000e+00> : vector<16x16xf32>
    %16 = tpu.matmul %15, %10, %cst_25 {dimension_numbers = #tpu.dot_dimension_numbers<[1], [0], [0], [1], [0, 0, 1, 1], [], []>} : vector<16x16xf32>, vector<16x16xf32>, vector<16x16xf32> -> vector<16x16xf32>
    %cst_26 = arith.constant dense<0.000000e+00> : vector<16x32xf32>
    %17 = tpu.matmul %16, %14, %cst_26 {dimension_numbers = #tpu.dot_dimension_numbers<[1], [0], [0], [1], [0, 0, 1, 1], [], []>} : vector<16x16xf32>, vector<16x32xf32>, vector<16x32xf32> -> vector<16x32xf32>
    %c0_27 = arith.constant 0 : index
    %c2 = arith.constant 2 : index
    %c0_28 = arith.constant 0 : index
    %c0_29 = arith.constant 0 : index
    %18 = vector.load %arg1[%c0_27, %c2, %c0_28, %c0_29] : memref<1x4x16x16xf32, #tpu.memory_space<vmem>>, vector<1x1x16x16xf32>
    %19 = vector.shape_cast %18 : vector<1x1x16x16xf32> to vector<16x16xf32>
    %c0_30 = arith.constant 0 : index
    %c2_31 = arith.constant 2 : index
    %c0_32 = arith.constant 0 : index
    %c0_33 = arith.constant 0 : index
    %20 = vector.load %arg2[%c0_30, %c2_31, %c0_32, %c0_33] : memref<1x4x16x16xf32, #tpu.memory_space<vmem>>, vector<1x1x16x16xf32>
    %21 = vector.shape_cast %20 : vector<1x1x16x16xf32> to vector<16x16xf32>
    %c0_34 = arith.constant 0 : index
    %c2_35 = arith.constant 2 : index
    %c0_36 = arith.constant 0 : index
    %c0_37 = arith.constant 0 : index
    %22 = vector.load %arg3[%c0_34, %c2_35, %c0_36, %c0_37] : memref<1x4x16x32xf32, #tpu.memory_space<vmem>>, vector<1x1x16x32xf32>
    %23 = vector.shape_cast %22 : vector<1x1x16x32xf32> to vector<16x32xf32>
    %cst_38 = arith.constant dense<0.000000e+00> : vector<16x16xf32>
    %24 = tpu.matmul %19, %21, %cst_38 {dimension_numbers = #tpu.dot_dimension_numbers<[1], [0], [0], [1], [0, 0, 1, 1], [], []>} : vector<16x16xf32>, vector<16x16xf32>, vector<16x16xf32> -> vector<16x16xf32>
    %cst_39 = arith.constant dense<0.000000e+00> : vector<16x16xf32>
    %25 = tpu.matmul %24, %19, %cst_39 {dimension_numbers = #tpu.dot_dimension_numbers<[1], [0], [0], [1], [0, 0, 1, 1], [], []>} : vector<16x16xf32>, vector<16x16xf32>, vector<16x16xf32> -> vector<16x16xf32>
    %cst_40 = arith.constant dense<0.000000e+00> : vector<16x32xf32>
    %26 = tpu.matmul %25, %23, %cst_40 {dimension_numbers = #tpu.dot_dimension_numbers<[1], [0], [0], [1], [0, 0, 1, 1], [], []>} : vector<16x16xf32>, vector<16x32xf32>, vector<16x32xf32> -> vector<16x32xf32>
    %c0_41 = arith.constant 0 : index
    %c3 = arith.constant 3 : index
    %c0_42 = arith.constant 0 : index
    %c0_43 = arith.constant 0 : index
    %27 = vector.load %arg1[%c0_41, %c3, %c0_42, %c0_43] : memref<1x4x16x16xf32, #tpu.memory_space<vmem>>, vector<1x1x16x16xf32>
    %28 = vector.shape_cast %27 : vector<1x1x16x16xf32> to vector<16x16xf32>
    %c0_44 = arith.constant 0 : index
    %c3_45 = arith.constant 3 : index
    %c0_46 = arith.constant 0 : index
    %c0_47 = arith.constant 0 : index
    %29 = vector.load %arg2[%c0_44, %c3_45, %c0_46, %c0_47] : memref<1x4x16x16xf32, #tpu.memory_space<vmem>>, vector<1x1x16x16xf32>
    %30 = vector.shape_cast %29 : vector<1x1x16x16xf32> to vector<16x16xf32>
    %c0_48 = arith.constant 0 : index
    %c3_49 = arith.constant 3 : index
    %c0_50 = arith.constant 0 : index
    %c0_51 = arith.constant 0 : index
    %31 = vector.load %arg3[%c0_48, %c3_49, %c0_50, %c0_51] : memref<1x4x16x32xf32, #tpu.memory_space<vmem>>, vector<1x1x16x32xf32>
    %32 = vector.shape_cast %31 : vector<1x1x16x32xf32> to vector<16x32xf32>
    %cst_52 = arith.constant dense<0.000000e+00> : vector<16x16xf32>
    %33 = tpu.matmul %28, %30, %cst_52 {dimension_numbers = #tpu.dot_dimension_numbers<[1], [0], [0], [1], [0, 0, 1, 1], [], []>} : vector<16x16xf32>, vector<16x16xf32>, vector<16x16xf32> -> vector<16x16xf32>
    %cst_53 = arith.constant dense<0.000000e+00> : vector<16x16xf32>
    %34 = tpu.matmul %33, %28, %cst_53 {dimension_numbers = #tpu.dot_dimension_numbers<[1], [0], [0], [1], [0, 0, 1, 1], [], []>} : vector<16x16xf32>, vector<16x16xf32>, vector<16x16xf32> -> vector<16x16xf32>
    %cst_54 = arith.constant dense<0.000000e+00> : vector<16x32xf32>
    %35 = tpu.matmul %34, %32, %cst_54 {dimension_numbers = #tpu.dot_dimension_numbers<[1], [0], [0], [1], [0, 0, 1, 1], [], []>} : vector<16x16xf32>, vector<16x32xf32>, vector<16x32xf32> -> vector<16x32xf32>
    %36 = tpu.concatenate %8, %17, %26, %35 in 1 : vector<16x32xf32>, vector<16x32xf32>, vector<16x32xf32>, vector<16x32xf32> -> vector<16x128xf32>
    %c0_55 = arith.constant 0 : index
    %c0_56 = arith.constant 0 : index
    %37 = vector.load %arg4[%c0_55, %c0_56] : memref<128x128xf32, #tpu.memory_space<vmem>>, vector<128x128xf32>
    %cst_57 = arith.constant dense<0.000000e+00> : vector<16x128xf32>
    %38 = tpu.matmul %36, %37, %cst_57 {dimension_numbers = #tpu.dot_dimension_numbers<[1], [0], [0], [1], [0, 0, 1, 1], [], []>} : vector<16x128xf32>, vector<128x128xf32>, vector<16x128xf32> -> vector<16x128xf32>
    %cst_58 = arith.constant 0.000000e+00 : f32
    %39 = vector.broadcast %cst_58 : f32 to vector<16x128xf32>
    %40 = arith.maximumf %38, %39 : vector<16x128xf32>
    %c0_59 = arith.constant 0 : index
    %c0_60 = arith.constant 0 : index
    %c0_61 = arith.constant 0 : index
    %41 = vector.load %arg5[%c0_59, %c0_60, %c0_61] : memref<1x16x128xf32, #tpu.memory_space<vmem>>, vector<1x16x128xf32>
    %42 = vector.shape_cast %41 : vector<1x16x128xf32> to vector<16x128xf32>
    %43 = vector.shape_cast %40 : vector<16x128xf32> to vector<1x16x128xf32>
    tpu.vector_store %arg5[%c0_59, %c0_60, %c0_61], %43 {strides = array<i32>} : memref<1x16x128xf32, #tpu.memory_space<vmem>>, vector<1x16x128xf32>,
    return
  }
  func.func @transform_0(%arg0: i32) -> (i32, i32, i32, i32) {
    %c0_i32 = arith.constant 0 : i32
    %c0_i32_0 = arith.constant 0 : i32
    %c0_i32_1 = arith.constant 0 : i32
    %c0_i32_2 = arith.constant 0 : i32
    return %arg0, %c0_i32, %c0_i32_0, %c0_i32_1 : i32, i32, i32, i32
  }
  func.func @transform_1(%arg0: i32) -> (i32, i32, i32, i32) {
    %c0_i32 = arith.constant 0 : i32
    %c0_i32_0 = arith.constant 0 : i32
    %c0_i32_1 = arith.constant 0 : i32
    %c0_i32_2 = arith.constant 0 : i32
    return %arg0, %c0_i32, %c0_i32_0, %c0_i32_1 : i32, i32, i32, i32
  }
  func.func @transform_2(%arg0: i32) -> (i32, i32, i32, i32) {
    %c0_i32 = arith.constant 0 : i32
    %c0_i32_0 = arith.constant 0 : i32
    %c0_i32_1 = arith.constant 0 : i32
    %c0_i32_2 = arith.constant 0 : i32
    return %arg0, %c0_i32, %c0_i32_0, %c0_i32_1 : i32, i32, i32, i32
  }
  func.func @transform_3(%arg0: i32) -> (i32, i32) {
    %c0_i32 = arith.constant 0 : i32
    %c0_i32_0 = arith.constant 0 : i32
    %c0_i32_1 = arith.constant 0 : i32
    return %c0_i32, %c0_i32_0 : i32, i32
  }
  func.func @transform_4(%arg0: i32) -> (i32, i32, i32) {
    %c0_i32 = arith.constant 0 : i32
    %c0_i32_0 = arith.constant 0 : i32
    %c0_i32_1 = arith.constant 0 : i32
    return %arg0, %c0_i32, %c0_i32_0 : i32, i32, i32
  }
}

</mosaic_0001>

<llo_original>
// kernel: tpu_custom_call.1
$region0: #{tpu_custom_call.1}
  #allocation0 [shape = 'u32[]', space=smem, size = 0x4, offset = 0x4, fixed_abs, tag = 'smem constant byte address 0x4 - core index']
  #allocation1 [shape = 'u32[144,128]{1,0:T(1,128)}', space=vmem, size = 0x12000, scoped, tag = 'internal scratch']
  %s0 = inlined_call_operand.hbm [shape: f32[2,4,16,16], index: 0, kind: input, shape index: {}]
  %s1 = inlined_call_operand.hbm [shape: f32[2,4,16,16], index: 1, kind: input, shape index: {}]
  %s2 = inlined_call_operand.hbm [shape: f32[2,4,16,32], index: 2, kind: input, shape index: {}]
  %s3 = inlined_call_operand.hbm [shape: f32[128,128], index: 3, kind: input, shape index: {}]
  %s4 = inlined_call_operand.hbm [shape: f32[2,16,128], index: 4, kind: output, shape index: {}]
  %s5 = sld [smem:[#allocation0]]
  $region65: #{tpu_custom_call.1} parent=0
    _
  %s7 = ssub.s32 1, %s5
  %s8 = scalar_select 0, %s7, %s5
  $region1: #{tpu_custom_call.1} parent=0
    #allocation2 [shape = 'u8[65536]{0}', space=vmem, size = 0x10000, scoped, tag = 'input window, operand 0']
    #allocation3 [shape = 's32[2]{0}', space=sflag, size = 0x8, scoped, tag = 'scoped memory for tpu_custom_call.1']
    #allocation4 [shape = 's32[2]{0}', space=sflag, size = 0x8, scoped, tag = 'scoped memory for tpu_custom_call.1']
    #allocation5 [shape = 'u8[65536]{0}', space=vmem, size = 0x10000, scoped, tag = 'input window, operand 1']
    #allocation6 [shape = 's32[2]{0}', space=sflag, size = 0x8, scoped, tag = 'scoped memory for tpu_custom_call.1']
    #allocation7 [shape = 'u8[65536]{0}', space=vmem, size = 0x10000, scoped, tag = 'input window, operand 2']
    #allocation8 [shape = 'u8[65536]{0}', space=vmem, size = 0x10000, scoped, tag = 'input window, operand 3, single buffered']
    #allocation9 [shape = 's32[1]{0}', space=sflag, size = 0x4, scoped, tag = 'scoped memory for tpu_custom_call.1']
    #allocation10 [shape = 'u8[16384]{0}', space=vmem, size = 0x4000, scoped, tag = 'output window, operand 0']
    %9 = vsyncpa [#allocation3], 0
    %s10 = scalar_lea.sflag [#allocation3], 1
    %11 = vsyncpa %s10, 0
    %12 = vsyncpa [#allocation6], 0
    %s13 = scalar_lea.sflag [#allocation6], 1
    %14 = vsyncpa %s13, 0
    %15 = vsyncpa [#allocation9], 0
    %16 = vsyncpa [#allocation4], 0
    %s17 = scalar_lea.sflag [#allocation4], 1
    %18 = vsyncpa %s17, 0
    loop: start=0, step=1, limit=4
    $region2: #{tpu_custom_call.1} parent=1 // loop_pre_header
      _
    $region3: #{tpu_custom_call.1} parent=1 // loop_header
      %s20 = sphi 0, %s24
      %p21 = scmp.ge.s32.totalorder %s20, 4
      %s30 = sphi 0, %s32
      %s33 = sphi 0, %s30
      %s34 = sphi 0, %s33
      %s50 = sphi 0, %s34
      %s56 = sphi 0, %s58
      %s59 = sphi 0, %s56
      %s60 = sphi 0, %s59
      %s76 = sphi 0, %s60
      %s82 = sphi 0, %s84
      %s85 = sphi 0, %s82
      %s86 = sphi 0, %s85
      %s102 = sphi 0, %s86
      %s106 = sphi 0, %s106
      %s108 = sphi 0, %s106
      %s109 = sphi 0, %s108
      %s123 = sphi 0, %s109
      %s129 = sphi 0, %s131
      %s132 = sphi 0, %s129
      %s133 = sphi 0, %s132
      %s149 = sphi 0, %s133
    $region4: #{tpu_custom_call.1} parent=1 // loop_header_branch
      %23 = sbr.rel (%p21) target = $region8
    $region5: #{tpu_custom_call.1} parent=1 // loop_body
      %s25 = ssub.s32 %s20, 1
      %s26 = ssub.s32 %s20, 2
      %s27 = sadd.s32 %s20, 1
      %s28 = ssub.s32 %s20, %s27
      %p29 = scmp.eq.s32.totalorder %s28, 0
      %s31 = sadd.s32 %s30, 1
      %s32 = scalar_select %p29, %s30, %s31
      %p35 = pneg %p29
      %p36 = scmp.eq.s32.totalorder %s20, 1
      %p37 = por %p35, %p36
      %p38 = scmp.ne.s32.totalorder %s30, %s33
      %p39 = scmp.eq.s32.totalorder %s20, 0
      %p40 = por %p38, %p39
      %p41 = scmp.ne.s32.totalorder %s30, %s33
      %p42 = scmp.eq.s32.totalorder %s25, 1
      %p43 = por %p41, %p42
      %p44 = scmp.ne.s32.totalorder %s33, %s34
      %p45 = scmp.eq.s32.totalorder %s25, 0
      %p46 = por %p44, %p45
      %p47 = scmp.ne.s32.totalorder %s33, %s34
      %p48 = scmp.eq.s32.totalorder %s26, 1
      %p49 = por %p47, %p48
      %p51 = scmp.ne.s32.totalorder %s34, %s50
      %p52 = scmp.eq.s32.totalorder %s26, 0
      %p53 = por %p51, %p52
      %s54 = ssub.s32 %s20, %s27
      %p55 = scmp.eq.s32.totalorder %s54, 0
      %s57 = sadd.s32 %s56, 1
      %s58 = scalar_select %p55, %s56, %s57
      %p61 = pneg %p55
      %p62 = scmp.eq.s32.totalorder %s20, 1
      %p63 = por %p61, %p62
      %p64 = scmp.ne.s32.totalorder %s56, %s59
      %p65 = scmp.eq.s32.totalorder %s20, 0
      %p66 = por %p64, %p65
      %p67 = scmp.ne.s32.totalorder %s56, %s59
      %p68 = scmp.eq.s32.totalorder %s25, 1
      %p69 = por %p67, %p68
      %p70 = scmp.ne.s32.totalorder %s59, %s60
      %p71 = scmp.eq.s32.totalorder %s25, 0
      %p72 = por %p70, %p71
      %p73 = scmp.ne.s32.totalorder %s59, %s60
      %p74 = scmp.eq.s32.totalorder %s26, 1
      %p75 = por %p73, %p74
      %p77 = scmp.ne.s32.totalorder %s60, %s76
      %p78 = scmp.eq.s32.totalorder %s26, 0
      %p79 = por %p77, %p78
      %s80 = ssub.s32 %s20, %s27
      %p81 = scmp.eq.s32.totalorder %s80, 0
      %s83 = sadd.s32 %s82, 1
      %s84 = scalar_select %p81, %s82, %s83
      %p87 = pneg %p81
      %p88 = scmp.eq.s32.totalorder %s20, 1
      %p89 = por %p87, %p88
      %p90 = scmp.ne.s32.totalorder %s82, %s85
      %p91 = scmp.eq.s32.totalorder %s20, 0
      %p92 = por %p90, %p91
      %p93 = scmp.ne.s32.totalorder %s82, %s85
      %p94 = scmp.eq.s32.totalorder %s25, 1
      %p95 = por %p93, %p94
      %p96 = scmp.ne.s32.totalorder %s85, %s86
      %p97 = scmp.eq.s32.totalorder %s25, 0
      %p98 = por %p96, %p97
      %p99 = scmp.ne.s32.totalorder %s85, %s86
      %p100 = scmp.eq.s32.totalorder %s26, 1
      %p101 = por %p99, %p100
      %p103 = scmp.ne.s32.totalorder %s86, %s102
      %p104 = scmp.eq.s32.totalorder %s26, 0
      %p105 = por %p103, %p104
      %s107 = sadd.s32 %s106, 1
      %p110 = scmp.eq.s32.totalorder %s20, 1
      %p111 = scmp.ne.s32.totalorder %s106, %s108
      %p112 = scmp.eq.s32.totalorder %s20, 0
      %p113 = por %p111, %p112
      %p114 = scmp.ne.s32.totalorder %s106, %s108
      %p115 = scmp.eq.s32.totalorder %s25, 1
      %p116 = por %p114, %p115
      %p117 = scmp.ne.s32.totalorder %s108, %s109
      %p118 = scmp.eq.s32.totalorder %s25, 0
      %p119 = por %p117, %p118
      %p120 = scmp.ne.s32.totalorder %s108, %s109
      %p121 = scmp.eq.s32.totalorder %s26, 1
      %p122 = por %p120, %p121
      %p124 = scmp.ne.s32.totalorder %s109, %s123
      %p125 = scmp.eq.s32.totalorder %s26, 0
      %p126 = por %p124, %p125
      %s127 = ssub.s32 %s20, %s27
      %p128 = scmp.eq.s32.totalorder %s127, 0
      %s130 = sadd.s32 %s129, 1
      %s131 = scalar_select %p128, %s129, %s130
      %p134 = pneg %p128
      %p135 = scmp.eq.s32.totalorder %s20, 1
      %p136 = por %p134, %p135
      %p137 = scmp.ne.s32.totalorder %s129, %s132
      %p138 = scmp.eq.s32.totalorder %s20, 0
      %p139 = por %p137, %p138
      %p140 = scmp.ne.s32.totalorder %s129, %s132
      %p141 = scmp.eq.s32.totalorder %s25, 1
      %p142 = por %p140, %p141
      %p143 = scmp.ne.s32.totalorder %s132, %s133
      %p144 = scmp.eq.s32.totalorder %s25, 0
      %p145 = por %p143, %p144
      %p146 = scmp.ne.s32.totalorder %s132, %s133
      %p147 = scmp.eq.s32.totalorder %s26, 1
      %p148 = por %p146, %p147
      %p150 = scmp.ne.s32.totalorder %s133, %s149
      %p151 = scmp.eq.s32.totalorder %s26, 0
      %p152 = por %p150, %p151
      %p153 = scmp.le.s32.totalorder 1, %s20
      %p154 = scmp.lt.s32.totalorder %s20, 3
      %p155 = pnand %p153, %p154
      %p156 = pneg %p155
      // Predicated region
      $region9: #{tpu_custom_call.1} parent=5 // pred_check
        _
      $region10: #{tpu_custom_call.1} parent=5 // pred_check_branch
        %158 = sbr.rel (%p155) target = $region12
      $region11: #{tpu_custom_call.1} parent=5 // pred_region
        %s159 = ssub.s32 %s20, 1
        // Predicated region
        $region13: #{tpu_custom_call.1} parent=11 // pred_check
          %p160 = pneg %p119
        $region14: #{tpu_custom_call.1} parent=11 // pred_check_branch
          %162 = sbr.rel (%p160) target = $region16
        $region15: #{tpu_custom_call.1} parent=11 // pred_region
          %s164 = ssub.s32 2048, 2048
          %165 = vsyncadd [#allocation9], %s164
          %s166 = sshll.u32 [#allocation8], 4
          %s167 = int_to_ptr.vmem [resolvable:$true] %s166
          %172 = dma.hbm_to_vmem [thread:$0]  %s3, 2048, %s167, [#allocation9], 128, 128, 8
        $region16: #{tpu_custom_call.1} parent=11 // pred_fallthru
          _
      $region12: #{tpu_custom_call.1} parent=5 // pred_fallthru
        _
      %p173 = scmp.lt.s32.totalorder %s20, 2
      // Predicated region
      $region17: #{tpu_custom_call.1} parent=5 // pred_check
        %p174 = pneg %p173
      $region18: #{tpu_custom_call.1} parent=5 // pred_check_branch
        %176 = sbr.rel (%p174) target = $region20
      $region19: #{tpu_custom_call.1} parent=5 // pred_region
        // Predicated region
        $region21: #{tpu_custom_call.1} parent=19 // pred_check
          %p177 = pneg %p40
        $region22: #{tpu_custom_call.1} parent=19 // pred_check_branch
          %179 = sbr.rel (%p177) target = $region24
        $region23: #{tpu_custom_call.1} parent=19 // pred_region
          %s180 = sand.u32 %s30, 1
          %s181 = scalar_lea.sflag [#allocation3], %s180
          %s182 = sand.u32 %s30, 1
          %s183 = smul.addr %s182, 64
          %s184 = scalar_lea.vmem [#allocation2], %s183
          %s186 = ssub.s32 1024, 1024
          %187 = vsyncadd %s181, %s186
          %s188 = smul.addr %s20, 8
          %s189 = smul.addr %s188, 128
          %s190 = scalar_lea.hbm %s0, %s189
          %s191 = sshll.u32 %s184, 4
          %s192 = int_to_ptr.vmem [resolvable:$true] %s191
          %197 = dma.hbm_to_vmem [thread:$0]  %s190, 1024, %s192, %s181, 128, 128, 8
        $region24: #{tpu_custom_call.1} parent=19 // pred_fallthru
          _
        // Predicated region
        $region25: #{tpu_custom_call.1} parent=19 // pred_check
          %p198 = pneg %p66
        $region26: #{tpu_custom_call.1} parent=19 // pred_check_branch
          %200 = sbr.rel (%p198) target = $region28
        $region27: #{tpu_custom_call.1} parent=19 // pred_region
          %s201 = sand.u32 %s20, 1
          %s202 = scalar_lea.sflag [#allocation6], %s201
          %s203 = sand.u32 %s56, 1
          %s204 = smul.addr %s203, 64
          %s205 = scalar_lea.vmem [#allocation5], %s204
          %s207 = ssub.s32 1024, 1024
          %208 = vsyncadd %s202, %s207
          %s209 = smul.addr %s20, 8
          %s210 = smul.addr %s209, 128
          %s211 = scalar_lea.hbm %s1, %s210
          %s212 = sshll.u32 %s205, 4
          %s213 = int_to_ptr.vmem [resolvable:$true] %s212
          %218 = dma.hbm_to_vmem [thread:$0]  %s211, 1024, %s213, %s202, 128, 128, 8
        $region28: #{tpu_custom_call.1} parent=19 // pred_fallthru
          _
        // Predicated region
        $region29: #{tpu_custom_call.1} parent=19 // pred_check
          %p219 = pneg %p92
        $region30: #{tpu_custom_call.1} parent=19 // pred_check_branch
          %221 = sbr.rel (%p219) target = $region32
        $region31: #{tpu_custom_call.1} parent=19 // pred_region
          %s222 = sand.u32 %s20, 1
          %s223 = scalar_lea.sflag [#allocation6], %s222
          %s224 = sand.u32 %s82, 1
          %s225 = smul.addr %s224, 64
          %s226 = scalar_lea.vmem [#allocation7], %s225
          %s228 = ssub.s32 1024, 1024
          %229 = vsyncadd %s223, %s228
          %s230 = smul.addr %s20, 8
          %s231 = smul.addr %s230, 128
          %s232 = scalar_lea.hbm %s2, %s231
          %s233 = sshll.u32 %s226, 4
          %s234 = int_to_ptr.vmem [resolvable:$true] %s233
          %239 = dma.hbm_to_vmem [thread:$0]  %s232, 1024, %s234, %s223, 128, 128, 8
        $region32: #{tpu_custom_call.1} parent=19 // pred_fallthru
          _
      $region20: #{tpu_custom_call.1} parent=5 // pred_fallthru
        _
      %p240 = scmp.le.s32.totalorder 1, %s20
      %p241 = scmp.lt.s32.totalorder %s20, 3
      %p242 = pnand %p240, %p241
      %p243 = pneg %p242
      // Predicated region
      $region33: #{tpu_custom_call.1} parent=5 // pred_check
        _
      $region34: #{tpu_custom_call.1} parent=5 // pred_check_branch
        %245 = sbr.rel (%p242) target = $region36
      $region35: #{tpu_custom_call.1} parent=5 // pred_region
        %s246 = ssub.s32 %s20, 1
        %s247 = sand.u32 %s33, 1
        %s248 = scalar_lea.sflag [#allocation3], %s247
        %s249 = sand.u32 %s33, 1
        %s250 = smul.addr %s249, 64
        %s251 = scalar_lea.vmem [#allocation2], %s250
        // Predicated region
        $region37: #{tpu_custom_call.1} parent=35 // pred_check
          %p252 = pneg %p46
        $region38: #{tpu_custom_call.1} parent=35 // pred_check_branch
          %254 = sbr.rel (%p252) target = $region40
        $region39: #{tpu_custom_call.1} parent=35 // pred_region
          %255 = dma.done %s248, 1024
        $region40: #{tpu_custom_call.1} parent=35 // pred_fallthru
          _
        %s256 = sand.u32 %s25, 1
        %s257 = scalar_lea.sflag [#allocation6], %s256
        %s258 = sand.u32 %s59, 1
        %s259 = smul.addr %s258, 64
        %s260 = scalar_lea.vmem [#allocation5], %s259
        // Predicated region
        $region41: #{tpu_custom_call.1} parent=35 // pred_check
          %p261 = pneg %p72
        $region42: #{tpu_custom_call.1} parent=35 // pred_check_branch
          %263 = sbr.rel (%p261) target = $region44
        $region43: #{tpu_custom_call.1} parent=35 // pred_region
          %264 = dma.done %s257, 1024
        $region44: #{tpu_custom_call.1} parent=35 // pred_fallthru
          _
        %s265 = sand.u32 %s25, 1
        %s266 = scalar_lea.sflag [#allocation6], %s265
        %s267 = sand.u32 %s85, 1
        %s268 = smul.addr %s267, 64
        %s269 = scalar_lea.vmem [#allocation7], %s268
        // Predicated region
        $region45: #{tpu_custom_call.1} parent=35 // pred_check
          %p270 = pneg %p98
        $region46: #{tpu_custom_call.1} parent=35 // pred_check_branch
          %272 = sbr.rel (%p270) target = $region48
        $region47: #{tpu_custom_call.1} parent=35 // pred_region
          %273 = dma.done %s266, 1024
        $region48: #{tpu_custom_call.1} parent=35 // pred_fallthru
          _
        // Predicated region
        $region49: #{tpu_custom_call.1} parent=35 // pred_check
          %p274 = pneg %p119
        $region50: #{tpu_custom_call.1} parent=35 // pred_check_branch
          %276 = sbr.rel (%p274) target = $region52
        $region51: #{tpu_custom_call.1} parent=35 // pred_region
          %277 = dma.done [#allocation9], 2048
        $region52: #{tpu_custom_call.1} parent=35 // pred_fallthru
          _
        %s278 = sand.u32 %s33, 1
        %s279 = scalar_lea.sflag [#allocation3], %s278
        %s280 = sand.u32 %s33, 1
        %s281 = smul.addr %s280, 64
        %s282 = scalar_lea.vmem [#allocation2], %s281
        %p283 = pneg %p46
        %p284 = pneg %p43
        %s285 = sand.u32 %s25, 1
        %s286 = scalar_lea.sflag [#allocation6], %s285
        %s287 = sand.u32 %s59, 1
        %s288 = smul.addr %s287, 64
        %s289 = scalar_lea.vmem [#allocation5], %s288
        %p290 = pneg %p72
        %p291 = pneg %p69
        %s292 = sand.u32 %s25, 1
        %s293 = scalar_lea.sflag [#allocation6], %s292
        %s294 = sand.u32 %s85, 1
        %s295 = smul.addr %s294, 64
        %s296 = scalar_lea.vmem [#allocation7], %s295
        %p297 = pneg %p98
        %p298 = pneg %p95
        %p299 = pneg %p119
        %p300 = pneg %p116
        %p301 = pneg %p145
        %p302 = pneg %p142
        %s303 = sand.u32 %s132, 1
        %s304 = scalar_lea.sflag [#allocation4], %s303
        %s305 = sand.u32 %s132, 1
        %s306 = smul.addr %s305, 16
        %s307 = scalar_lea.vmem [#allocation10], %s306
        %v308 = vld [vmem:[%s251] sm:$0xff]
        %v309 = vld [vmem:[%s251 + $0x8] sm:$0xff]
        %v310 = vld [vmem:[%s260] sm:$0xff]
        %v311 = vld [vmem:[%s260 + $0x8] sm:$0xff]
        %v312 = vld [vmem:[%s269] sm:$0xff]
        %v313 = vld [vmem:[%s269 + $0x8] sm:$0xff]
        %vm314 = vcmask 130048
        %v316 = vsel %vm314, %v308, 0
        %v319 = vsel %vm314, %v309, 0
        %321 = vmatprep.subr.mxu0 0.0
        %322 = vmatpush1.msra.mxu0 %v310
        %323 = vmatprep.subr.mxu0 0.0
        %324 = vmatpush1.msra.mxu0 %v311
        %325 = vmatprep.subr.mxu0 0.0
        %326 = vmatpush1.msra.mxu0 0.0
        %327 = vmatprep.subr.mxu0 0.0
        %328 = vmatpush1.msra.mxu0 0.0
        %329 = vmatprep.subr.mxu0 0.0
        %330 = vmatpush1.msra.mxu0 0.0
        %331 = vmatprep.subr.mxu0 0.0
        %332 = vmatpush1.msra.mxu0 0.0
        %333 = vmatprep.subr.mxu0 0.0
        %334 = vmatpush1.msra.mxu0 0.0
        %335 = vmatprep.subr.mxu0 0.0
        %336 = vmatpush1.msra.mxu0 0.0
        %337 = vmatprep.subr.mxu0 0.0
        %338 = vmatpush1.msra.mxu0 0.0
        %339 = vmatprep.subr.mxu0 0.0
        %340 = vmatpush1.msra.mxu0 0.0
        %341 = vmatprep.subr.mxu0 0.0
        %342 = vmatpush1.msra.mxu0 0.0
        %343 = vmatprep.subr.mxu0 0.0
        %344 = vmatpush1.msra.mxu0 0.0
        %345 = vmatprep.subr.mxu0 0.0
        %346 = vmatpush1.msra.mxu0 0.0
        %347 = vmatprep.subr.mxu0 0.0
        %348 = vmatpush1.msra.mxu0 0.0
        %349 = vmatprep.subr.mxu0 0.0
        %350 = vmatpush1.msra.mxu0 0.0
        %351 = vmatprep.subr.mxu0 0.0
        %352 = vmatpush1.msra.mxu0 0.0
        %353 = vmatprep.subr.mxu0 0.0
        %354 = vmatpush1.msra.mxu0 0.0
        %355 = vmatprep.subr.mxu0 0.0
        %356 = vmatpush1.msra.mxu0 0.0
        %357 = vmatprep.subr.mxu0 0.0
        %358 = vmatpush1.msra.mxu0 0.0
        %359 = vmatprep.subr.mxu0 0.0
        %360 = vmatpush1.msra.mxu0 0.0
        %361 = vmatprep.subr.mxu0 0.0
        %362 = vmatpush1.msra.mxu0 0.0
        %363 = vmatprep.subr.mxu0 0.0
        %364 = vmatpush1.msra.mxu0 0.0
        %365 = vmatprep.subr.mxu0 0.0
        %366 = vmatpush1.msra.mxu0 0.0
        %367 = vmatprep.subr.mxu0 0.0
        %368 = vmatpush1.msra.mxu0 0.0
        %369 = vmatprep.subr.mxu0 0.0
        %370 = vmatpush1.msra.mxu0 0.0
        %371 = vmatprep.subr.mxu0 0.0
        %372 = vmatpush1.msra.mxu0 0.0
        %373 = vmatprep.subr.mxu0 0.0
        %374 = vmatpush1.msra.mxu0 0.0
        %375 = vmatprep.subr.mxu0 0.0
        %376 = vmatpush1.msra.mxu0 0.0
        %377 = vmatprep.subr.mxu0 0.0
        %378 = vmatpush1.msra.mxu0 0.0
        %379 = vmatprep.subr.mxu0 0.0
        %380 = vmatpush1.msra.mxu0 0.0
        %381 = vmatprep.subr.mxu0 0.0
        %382 = vmatpush1.msra.mxu0 0.0
        %383 = vmatprep.subr.mxu0 0.0
        %384 = vmatpush1.msra.mxu0 0.0
        %385 = vmatprep.mubr.f32.mxu0 0.0
        %386 = vmatmul.mubr.f32.gmra.mrb[0].mxu0 %v316
        %v387 = vpop.f32.mrb[0].mxu0
        %v388 = vadd.f32 0.0, %v387
        %v389 = vpop.f32.mrb[0].mxu0
        %390 = vmatprep.mubr.f32.mxu0 0.0
        %391 = vmatmul.mubr.f32.gmra.mrb[0].mxu0 %v319
        %v392 = vpop.f32.mrb[0].mxu0
        %v393 = vadd.f32 0.0, %v392
        %v394 = vpop.f32.mrb[0].mxu0
        %395 = vdwg.mxu0
        %v397 = vsel %vm314, %v388, 0
        %v400 = vsel %vm314, %v393, 0
        %402 = vmatprep.subr.mxu0 0.0
        %403 = vmatpush1.msra.mxu0 %v308
        %404 = vmatprep.subr.mxu0 0.0
        %405 = vmatpush1.msra.mxu0 %v309
        %406 = vmatprep.subr.mxu0 0.0
        %407 = vmatpush1.msra.mxu0 0.0
        %408 = vmatprep.subr.mxu0 0.0
        %409 = vmatpush1.msra.mxu0 0.0
        %410 = vmatprep.subr.mxu0 0.0
        %411 = vmatpush1.msra.mxu0 0.0
        %412 = vmatprep.subr.mxu0 0.0
        %413 = vmatpush1.msra.mxu0 0.0
        %414 = vmatprep.subr.mxu0 0.0
        %415 = vmatpush1.msra.mxu0 0.0
        %416 = vmatprep.subr.mxu0 0.0
        %417 = vmatpush1.msra.mxu0 0.0
        %418 = vmatprep.subr.mxu0 0.0
        %419 = vmatpush1.msra.mxu0 0.0
        %420 = vmatprep.subr.mxu0 0.0
        %421 = vmatpush1.msra.mxu0 0.0
        %422 = vmatprep.subr.mxu0 0.0
        %423 = vmatpush1.msra.mxu0 0.0
        %424 = vmatprep.subr.mxu0 0.0
        %425 = vmatpush1.msra.mxu0 0.0
        %426 = vmatprep.subr.mxu0 0.0
        %427 = vmatpush1.msra.mxu0 0.0
        %428 = vmatprep.subr.mxu0 0.0
        %429 = vmatpush1.msra.mxu0 0.0
        %430 = vmatprep.subr.mxu0 0.0
        %431 = vmatpush1.msra.mxu0 0.0
        %432 = vmatprep.subr.mxu0 0.0
        %433 = vmatpush1.msra.mxu0 0.0
        %434 = vmatprep.subr.mxu0 0.0
        %435 = vmatpush1.msra.mxu0 0.0
        %436 = vmatprep.subr.mxu0 0.0
        %437 = vmatpush1.msra.mxu0 0.0
        %438 = vmatprep.subr.mxu0 0.0
        %439 = vmatpush1.msra.mxu0 0.0
        %440 = vmatprep.subr.mxu0 0.0
        %441 = vmatpush1.msra.mxu0 0.0
        %442 = vmatprep.subr.mxu0 0.0
        %443 = vmatpush1.msra.mxu0 0.0
        %444 = vmatprep.subr.mxu0 0.0
        %445 = vmatpush1.msra.mxu0 0.0
        %446 = vmatprep.subr.mxu0 0.0
        %447 = vmatpush1.msra.mxu0 0.0
        %448 = vmatprep.subr.mxu0 0.0
        %449 = vmatpush1.msra.mxu0 0.0
        %450 = vmatprep.subr.mxu0 0.0
        %451 = vmatpush1.msra.mxu0 0.0
        %452 = vmatprep.subr.mxu0 0.0
        %453 = vmatpush1.msra.mxu0 0.0
        %454 = vmatprep.subr.mxu0 0.0
        %455 = vmatpush1.msra.mxu0 0.0
        %456 = vmatprep.subr.mxu0 0.0
        %457 = vmatpush1.msra.mxu0 0.0
        %458 = vmatprep.subr.mxu0 0.0
        %459 = vmatpush1.msra.mxu0 0.0
        %460 = vmatprep.subr.mxu0 0.0
        %461 = vmatpush1.msra.mxu0 0.0
        %462 = vmatprep.subr.mxu0 0.0
        %463 = vmatpush1.msra.mxu0 0.0
        %464 = vmatprep.subr.mxu0 0.0
        %465 = vmatpush1.msra.mxu0 0.0
        %466 = vmatprep.mubr.f32.mxu0 0.0
        %467 = vmatmul.mubr.f32.gmra.mrb[0].mxu0 %v397
        %v468 = vpop.f32.mrb[0].mxu0
        %v469 = vadd.f32 0.0, %v468
        %v470 = vpop.f32.mrb[0].mxu0
        %471 = vmatprep.mubr.f32.mxu0 0.0
        %472 = vmatmul.mubr.f32.gmra.mrb[0].mxu0 %v400
        %v473 = vpop.f32.mrb[0].mxu0
        %v474 = vadd.f32 0.0, %v473
        %v475 = vpop.f32.mrb[0].mxu0
        %476 = vdwg.mxu0
        %v478 = vsel %vm314, %v469, 0
        %v481 = vsel %vm314, %v474, 0
        %483 = vmatprep.subr.mxu0 0.0
        %484 = vmatpush1.msra.mxu0 %v312
        %485 = vmatprep.subr.mxu0 0.0
        %486 = vmatpush1.msra.mxu0 %v313
        %487 = vmatprep.subr.mxu0 0.0
        %488 = vmatpush1.msra.mxu0 0.0
        %489 = vmatprep.subr.mxu0 0.0
        %490 = vmatpush1.msra.mxu0 0.0
        %491 = vmatprep.subr.mxu0 0.0
        %492 = vmatpush1.msra.mxu0 0.0
        %493 = vmatprep.subr.mxu0 0.0
        %494 = vmatpush1.msra.mxu0 0.0
        %495 = vmatprep.subr.mxu0 0.0
        %496 = vmatpush1.msra.mxu0 0.0
        %497 = vmatprep.subr.mxu0 0.0
        %498 = vmatpush1.msra.mxu0 0.0
        %499 = vmatprep.subr.mxu0 0.0
        %500 = vmatpush1.msra.mxu0 0.0
        %501 = vmatprep.subr.mxu0 0.0
        %502 = vmatpush1.msra.mxu0 0.0
        %503 = vmatprep.subr.mxu0 0.0
        %504 = vmatpush1.msra.mxu0 0.0
        %505 = vmatprep.subr.mxu0 0.0
        %506 = vmatpush1.msra.mxu0 0.0
        %507 = vmatprep.subr.mxu0 0.0
        %508 = vmatpush1.msra.mxu0 0.0
        %509 = vmatprep.subr.mxu0 0.0
        %510 = vmatpush1.msra.mxu0 0.0
        %511 = vmatprep.subr.mxu0 0.0
        %512 = vmatpush1.msra.mxu0 0.0
        %513 = vmatprep.subr.mxu0 0.0
        %514 = vmatpush1.msra.mxu0 0.0
        %515 = vmatprep.subr.mxu0 0.0
        %516 = vmatpush1.msra.mxu0 0.0
        %517 = vmatprep.subr.mxu0 0.0
        %518 = vmatpush1.msra.mxu0 0.0
        %519 = vmatprep.subr.mxu0 0.0
        %520 = vmatpush1.msra.mxu0 0.0
        %521 = vmatprep.subr.mxu0 0.0
        %522 = vmatpush1.msra.mxu0 0.0
        %523 = vmatprep.subr.mxu0 0.0
        %524 = vmatpush1.msra.mxu0 0.0
        %525 = vmatprep.subr.mxu0 0.0
        %526 = vmatpush1.msra.mxu0 0.0
        %527 = vmatprep.subr.mxu0 0.0
        %528 = vmatpush1.msra.mxu0 0.0
        %529 = vmatprep.subr.mxu0 0.0
        %530 = vmatpush1.msra.mxu0 0.0
        %531 = vmatprep.subr.mxu0 0.0
        %532 = vmatpush1.msra.mxu0 0.0
        %533 = vmatprep.subr.mxu0 0.0
        %534 = vmatpush1.msra.mxu0 0.0
        %535 = vmatprep.subr.mxu0 0.0
        %536 = vmatpush1.msra.mxu0 0.0
        %537 = vmatprep.subr.mxu0 0.0
        %538 = vmatpush1.msra.mxu0 0.0
        %539 = vmatprep.subr.mxu0 0.0
        %540 = vmatpush1.msra.mxu0 0.0
        %541 = vmatprep.subr.mxu0 0.0
        %542 = vmatpush1.msra.mxu0 0.0
        %543 = vmatprep.subr.mxu0 0.0
        %544 = vmatpush1.msra.mxu0 0.0
        %545 = vmatprep.subr.mxu0 0.0
        %546 = vmatpush1.msra.mxu0 0.0
        %547 = vmatprep.mubr.f32.mxu0 0.0
        %548 = vmatmul.mubr.f32.gmra.mrb[0].mxu0 %v478
        %v549 = vpop.f32.mrb[0].mxu0
        %v550 = vadd.f32 0.0, %v549
        %v551 = vpop.f32.mrb[0].mxu0
        %552 = vmatprep.mubr.f32.mxu0 0.0
        %553 = vmatmul.mubr.f32.gmra.mrb[0].mxu0 %v481
        %v554 = vpop.f32.mrb[0].mxu0
        %v555 = vadd.f32 0.0, %v554
        %v556 = vpop.f32.mrb[0].mxu0
        %557 = vdwg.mxu0
        %s558 = scalar_lea.vmem %s251, 16 [#allocation2]
        %v559 = vld [vmem:[%s558] sm:$0xff]
        %v560 = vld [vmem:[%s558 + $0x8] sm:$0xff]
        %s561 = scalar_lea.vmem %s260, 16 [#allocation5]
        %v562 = vld [vmem:[%s561] sm:$0xff]
        %v563 = vld [vmem:[%s561 + $0x8] sm:$0xff]
        %s564 = scalar_lea.vmem %s269, 16 [#allocation7]
        %v565 = vld [vmem:[%s564] sm:$0xff]
        %v566 = vld [vmem:[%s564 + $0x8] sm:$0xff]
        %v568 = vsel %vm314, %v559, 0
        %v571 = vsel %vm314, %v560, 0
        %573 = vmatprep.subr.mxu0 0.0
        %574 = vmatpush1.msra.mxu0 %v562
        %575 = vmatprep.subr.mxu0 0.0
        %576 = vmatpush1.msra.mxu0 %v563
        %577 = vmatprep.subr.mxu0 0.0
        %578 = vmatpush1.msra.mxu0 0.0
        %579 = vmatprep.subr.mxu0 0.0
        %580 = vmatpush1.msra.mxu0 0.0
        %581 = vmatprep.subr.mxu0 0.0
        %582 = vmatpush1.msra.mxu0 0.0
        %583 = vmatprep.subr.mxu0 0.0
        %584 = vmatpush1.msra.mxu0 0.0
        %585 = vmatprep.subr.mxu0 0.0
        %586 = vmatpush1.msra.mxu0 0.0
        %587 = vmatprep.subr.mxu0 0.0
        %588 = vmatpush1.msra.mxu0 0.0
        %589 = vmatprep.subr.mxu0 0.0
        %590 = vmatpush1.msra.mxu0 0.0
        %591 = vmatprep.subr.mxu0 0.0
        %592 = vmatpush1.msra.mxu0 0.0
        %593 = vmatprep.subr.mxu0 0.0
        %594 = vmatpush1.msra.mxu0 0.0
        %595 = vmatprep.subr.mxu0 0.0
        %596 = vmatpush1.msra.mxu0 0.0
        %597 = vmatprep.subr.mxu0 0.0
        %598 = vmatpush1.msra.mxu0 0.0
        %599 = vmatprep.subr.mxu0 0.0
        %600 = vmatpush1.msra.mxu0 0.0
        %601 = vmatprep.subr.mxu0 0.0
        %602 = vmatpush1.msra.mxu0 0.0
        %603 = vmatprep.subr.mxu0 0.0
        %604 = vmatpush1.msra.mxu0 0.0
        %605 = vmatprep.subr.mxu0 0.0
        %606 = vmatpush1.msra.mxu0 0.0
        %607 = vmatprep.subr.mxu0 0.0
        %608 = vmatpush1.msra.mxu0 0.0
        %609 = vmatprep.subr.mxu0 0.0
        %610 = vmatpush1.msra.mxu0 0.0
        %611 = vmatprep.subr.mxu0 0.0
        %612 = vmatpush1.msra.mxu0 0.0
        %613 = vmatprep.subr.mxu0 0.0
        %614 = vmatpush1.msra.mxu0 0.0
        %615 = vmatprep.subr.mxu0 0.0
        %616 = vmatpush1.msra.mxu0 0.0
        %617 = vmatprep.subr.mxu0 0.0
        %618 = vmatpush1.msra.mxu0 0.0
        %619 = vmatprep.subr.mxu0 0.0
        %620 = vmatpush1.msra.mxu0 0.0
        %621 = vmatprep.subr.mxu0 0.0
        %622 = vmatpush1.msra.mxu0 0.0
        %623 = vmatprep.subr.mxu0 0.0
        %624 = vmatpush1.msra.mxu0 0.0
        %625 = vmatprep.subr.mxu0 0.0
        %626 = vmatpush1.msra.mxu0 0.0
        %627 = vmatprep.subr.mxu0 0.0
        %628 = vmatpush1.msra.mxu0 0.0
        %629 = vmatprep.subr.mxu0 0.0
        %630 = vmatpush1.msra.mxu0 0.0
        %631 = vmatprep.subr.mxu0 0.0
        %632 = vmatpush1.msra.mxu0 0.0
        %633 = vmatprep.subr.mxu0 0.0
        %634 = vmatpush1.msra.mxu0 0.0
        %635 = vmatprep.subr.mxu0 0.0
        %636 = vmatpush1.msra.mxu0 0.0
        %637 = vmatprep.mubr.f32.mxu0 0.0
        %638 = vmatmul.mubr.f32.gmra.mrb[0].mxu0 %v568
        %v639 = vpop.f32.mrb[0].mxu0
        %v640 = vadd.f32 0.0, %v639
        %v641 = vpop.f32.mrb[0].mxu0
        %642 = vmatprep.mubr.f32.mxu0 0.0
        %643 = vmatmul.mubr.f32.gmra.mrb[0].mxu0 %v571
        %v644 = vpop.f32.mrb[0].mxu0
        %v645 = vadd.f32 0.0, %v644
        %v646 = vpop.f32.mrb[0].mxu0
        %647 = vdwg.mxu0
        %v649 = vsel %vm314, %v640, 0
        %v652 = vsel %vm314, %v645, 0
        %654 = vmatprep.subr.mxu0 0.0
        %655 = vmatpush1.msra.mxu0 %v559
        %656 = vmatprep.subr.mxu0 0.0
        %657 = vmatpush1.msra.mxu0 %v560
        %658 = vmatprep.subr.mxu0 0.0
        %659 = vmatpush1.msra.mxu0 0.0
        %660 = vmatprep.subr.mxu0 0.0
        %661 = vmatpush1.msra.mxu0 0.0
        %662 = vmatprep.subr.mxu0 0.0
        %663 = vmatpush1.msra.mxu0 0.0
        %664 = vmatprep.subr.mxu0 0.0
        %665 = vmatpush1.msra.mxu0 0.0
        %666 = vmatprep.subr.mxu0 0.0
        %667 = vmatpush1.msra.mxu0 0.0
        %668 = vmatprep.subr.mxu0 0.0
        %669 = vmatpush1.msra.mxu0 0.0
        %670 = vmatprep.subr.mxu0 0.0
        %671 = vmatpush1.msra.mxu0 0.0
        %672 = vmatprep.subr.mxu0 0.0
        %673 = vmatpush1.msra.mxu0 0.0
        %674 = vmatprep.subr.mxu0 0.0
        %675 = vmatpush1.msra.mxu0 0.0
        %676 = vmatprep.subr.mxu0 0.0
        %677 = vmatpush1.msra.mxu0 0.0
        %678 = vmatprep.subr.mxu0 0.0
        %679 = vmatpush1.msra.mxu0 0.0
        %680 = vmatprep.subr.mxu0 0.0
        %681 = vmatpush1.msra.mxu0 0.0
        %682 = vmatprep.subr.mxu0 0.0
        %683 = vmatpush1.msra.mxu0 0.0
        %684 = vmatprep.subr.mxu0 0.0
        %685 = vmatpush1.msra.mxu0 0.0
        %686 = vmatprep.subr.mxu0 0.0
        %687 = vmatpush1.msra.mxu0 0.0
        %688 = vmatprep.subr.mxu0 0.0
        %689 = vmatpush1.msra.mxu0 0.0
        %690 = vmatprep.subr.mxu0 0.0
        %691 = vmatpush1.msra.mxu0 0.0
        %692 = vmatprep.subr.mxu0 0.0
        %693 = vmatpush1.msra.mxu0 0.0
        %694 = vmatprep.subr.mxu0 0.0
        %695 = vmatpush1.msra.mxu0 0.0
        %696 = vmatprep.subr.mxu0 0.0
        %697 = vmatpush1.msra.mxu0 0.0
        %698 = vmatprep.subr.mxu0 0.0
        %699 = vmatpush1.msra.mxu0 0.0
        %700 = vmatprep.subr.mxu0 0.0
        %701 = vmatpush1.msra.mxu0 0.0
        %702 = vmatprep.subr.mxu0 0.0
        %703 = vmatpush1.msra.mxu0 0.0
        %704 = vmatprep.subr.mxu0 0.0
        %705 = vmatpush1.msra.mxu0 0.0
        %706 = vmatprep.subr.mxu0 0.0
        %707 = vmatpush1.msra.mxu0 0.0
        %708 = vmatprep.subr.mxu0 0.0
        %709 = vmatpush1.msra.mxu0 0.0
        %710 = vmatprep.subr.mxu0 0.0
        %711 = vmatpush1.msra.mxu0 0.0
        %712 = vmatprep.subr.mxu0 0.0
        %713 = vmatpush1.msra.mxu0 0.0
        %714 = vmatprep.subr.mxu0 0.0
        %715 = vmatpush1.msra.mxu0 0.0
        %716 = vmatprep.subr.mxu0 0.0
        %717 = vmatpush1.msra.mxu0 0.0
        %718 = vmatprep.mubr.f32.mxu0 0.0
        %719 = vmatmul.mubr.f32.gmra.mrb[0].mxu0 %v649
        %v720 = vpop.f32.mrb[0].mxu0
        %v721 = vadd.f32 0.0, %v720
        %v722 = vpop.f32.mrb[0].mxu0
        %723 = vmatprep.mubr.f32.mxu0 0.0
        %724 = vmatmul.mubr.f32.gmra.mrb[0].mxu0 %v652
        %v725 = vpop.f32.mrb[0].mxu0
        %v726 = vadd.f32 0.0, %v725
        %v727 = vpop.f32.mrb[0].mxu0
        %728 = vdwg.mxu0
        %v730 = vsel %vm314, %v721, 0
        %v733 = vsel %vm314, %v726, 0
        %735 = vmatprep.subr.mxu0 0.0
        %736 = vmatpush1.msra.mxu0 %v565
        %737 = vmatprep.subr.mxu0 0.0
        %738 = vmatpush1.msra.mxu0 %v566
        %739 = vmatprep.subr.mxu0 0.0
        %740 = vmatpush1.msra.mxu0 0.0
        %741 = vmatprep.subr.mxu0 0.0
        %742 = vmatpush1.msra.mxu0 0.0
        %743 = vmatprep.subr.mxu0 0.0
        %744 = vmatpush1.msra.mxu0 0.0
        %745 = vmatprep.subr.mxu0 0.0
        %746 = vmatpush1.msra.mxu0 0.0
        %747 = vmatprep.subr.mxu0 0.0
        %748 = vmatpush1.msra.mxu0 0.0
        %749 = vmatprep.subr.mxu0 0.0
        %750 = vmatpush1.msra.mxu0 0.0
        %751 = vmatprep.subr.mxu0 0.0
        %752 = vmatpush1.msra.mxu0 0.0
        %753 = vmatprep.subr.mxu0 0.0
        %754 = vmatpush1.msra.mxu0 0.0
        %755 = vmatprep.subr.mxu0 0.0
        %756 = vmatpush1.msra.mxu0 0.0
        %757 = vmatprep.subr.mxu0 0.0
        %758 = vmatpush1.msra.mxu0 0.0
        %759 = vmatprep.subr.mxu0 0.0
        %760 = vmatpush1.msra.mxu0 0.0
        %761 = vmatprep.subr.mxu0 0.0
        %762 = vmatpush1.msra.mxu0 0.0
        %763 = vmatprep.subr.mxu0 0.0
        %764 = vmatpush1.msra.mxu0 0.0
        %765 = vmatprep.subr.mxu0 0.0
        %766 = vmatpush1.msra.mxu0 0.0
        %767 = vmatprep.subr.mxu0 0.0
        %768 = vmatpush1.msra.mxu0 0.0
        %769 = vmatprep.subr.mxu0 0.0
        %770 = vmatpush1.msra.mxu0 0.0
        %771 = vmatprep.subr.mxu0 0.0
        %772 = vmatpush1.msra.mxu0 0.0
        %773 = vmatprep.subr.mxu0 0.0
        %774 = vmatpush1.msra.mxu0 0.0
        %775 = vmatprep.subr.mxu0 0.0
        %776 = vmatpush1.msra.mxu0 0.0
        %777 = vmatprep.subr.mxu0 0.0
        %778 = vmatpush1.msra.mxu0 0.0
        %779 = vmatprep.subr.mxu0 0.0
        %780 = vmatpush1.msra.mxu0 0.0
        %781 = vmatprep.subr.mxu0 0.0
        %782 = vmatpush1.msra.mxu0 0.0
        %783 = vmatprep.subr.mxu0 0.0
        %784 = vmatpush1.msra.mxu0 0.0
        %785 = vmatprep.subr.mxu0 0.0
        %786 = vmatpush1.msra.mxu0 0.0
        %787 = vmatprep.subr.mxu0 0.0
        %788 = vmatpush1.msra.mxu0 0.0
        %789 = vmatprep.subr.mxu0 0.0
        %790 = vmatpush1.msra.mxu0 0.0
        %791 = vmatprep.subr.mxu0 0.0
        %792 = vmatpush1.msra.mxu0 0.0
        %793 = vmatprep.subr.mxu0 0.0
        %794 = vmatpush1.msra.mxu0 0.0
        %795 = vmatprep.subr.mxu0 0.0
        %796 = vmatpush1.msra.mxu0 0.0
        %797 = vmatprep.subr.mxu0 0.0
        %798 = vmatpush1.msra.mxu0 0.0
        %799 = vmatprep.mubr.f32.mxu0 0.0
        %800 = vmatmul.mubr.f32.gmra.mrb[0].mxu0 %v730
        %v801 = vpop.f32.mrb[0].mxu0
        %v802 = vadd.f32 0.0, %v801
        %v803 = vpop.f32.mrb[0].mxu0
        %804 = vmatprep.mubr.f32.mxu0 0.0
        %805 = vmatmul.mubr.f32.gmra.mrb[0].mxu0 %v733
        %v806 = vpop.f32.mrb[0].mxu0
        %v807 = vadd.f32 0.0, %v806
        %v808 = vpop.f32.mrb[0].mxu0
        %809 = vdwg.mxu0
        %s810 = scalar_lea.vmem %s251, 32 [#allocation2]
        %v811 = vld [vmem:[%s810] sm:$0xff]
        %v812 = vld [vmem:[%s810 + $0x8] sm:$0xff]
        %s813 = scalar_lea.vmem %s260, 32 [#allocation5]
        %v814 = vld [vmem:[%s813] sm:$0xff]
        %v815 = vld [vmem:[%s813 + $0x8] sm:$0xff]
        %s816 = scalar_lea.vmem %s269, 32 [#allocation7]
        %v817 = vld [vmem:[%s816] sm:$0xff]
        %v818 = vld [vmem:[%s816 + $0x8] sm:$0xff]
        %v820 = vsel %vm314, %v811, 0
        %v823 = vsel %vm314, %v812, 0
        %825 = vmatprep.subr.mxu0 0.0
        %826 = vmatpush1.msra.mxu0 %v814
        %827 = vmatprep.subr.mxu0 0.0
        %828 = vmatpush1.msra.mxu0 %v815
        %829 = vmatprep.subr.mxu0 0.0
        %830 = vmatpush1.msra.mxu0 0.0
        %831 = vmatprep.subr.mxu0 0.0
        %832 = vmatpush1.msra.mxu0 0.0
        %833 = vmatprep.subr.mxu0 0.0
        %834 = vmatpush1.msra.mxu0 0.0
        %835 = vmatprep.subr.mxu0 0.0
        %836 = vmatpush1.msra.mxu0 0.0
        %837 = vmatprep.subr.mxu0 0.0
        %838 = vmatpush1.msra.mxu0 0.0
        %839 = vmatprep.subr.mxu0 0.0
        %840 = vmatpush1.msra.mxu0 0.0
        %841 = vmatprep.subr.mxu0 0.0
        %842 = vmatpush1.msra.mxu0 0.0
        %843 = vmatprep.subr.mxu0 0.0
        %844 = vmatpush1.msra.mxu0 0.0
        %845 = vmatprep.subr.mxu0 0.0
        %846 = vmatpush1.msra.mxu0 0.0
        %847 = vmatprep.subr.mxu0 0.0
        %848 = vmatpush1.msra.mxu0 0.0
        %849 = vmatprep.subr.mxu0 0.0
        %850 = vmatpush1.msra.mxu0 0.0
        %851 = vmatprep.subr.mxu0 0.0
        %852 = vmatpush1.msra.mxu0 0.0
        %853 = vmatprep.subr.mxu0 0.0
        %854 = vmatpush1.msra.mxu0 0.0
        %855 = vmatprep.subr.mxu0 0.0
        %856 = vmatpush1.msra.mxu0 0.0
        %857 = vmatprep.subr.mxu0 0.0
        %858 = vmatpush1.msra.mxu0 0.0
        %859 = vmatprep.subr.mxu0 0.0
        %860 = vmatpush1.msra.mxu0 0.0
        %861 = vmatprep.subr.mxu0 0.0
        %862 = vmatpush1.msra.mxu0 0.0
        %863 = vmatprep.subr.mxu0 0.0
        %864 = vmatpush1.msra.mxu0 0.0
        %865 = vmatprep.subr.mxu0 0.0
        %866 = vmatpush1.msra.mxu0 0.0
        %867 = vmatprep.subr.mxu0 0.0
        %868 = vmatpush1.msra.mxu0 0.0
        %869 = vmatprep.subr.mxu0 0.0
        %870 = vmatpush1.msra.mxu0 0.0
        %871 = vmatprep.subr.mxu0 0.0
        %872 = vmatpush1.msra.mxu0 0.0
        %873 = vmatprep.subr.mxu0 0.0
        %874 = vmatpush1.msra.mxu0 0.0
        %875 = vmatprep.subr.mxu0 0.0
        %876 = vmatpush1.msra.mxu0 0.0
        %877 = vmatprep.subr.mxu0 0.0
        %878 = vmatpush1.msra.mxu0 0.0
        %879 = vmatprep.subr.mxu0 0.0
        %880 = vmatpush1.msra.mxu0 0.0
        %881 = vmatprep.subr.mxu0 0.0
        %882 = vmatpush1.msra.mxu0 0.0
        %883 = vmatprep.subr.mxu0 0.0
        %884 = vmatpush1.msra.mxu0 0.0
        %885 = vmatprep.subr.mxu0 0.0
        %886 = vmatpush1.msra.mxu0 0.0
        %887 = vmatprep.subr.mxu0 0.0
        %888 = vmatpush1.msra.mxu0 0.0
        %889 = vmatprep.mubr.f32.mxu0 0.0
        %890 = vmatmul.mubr.f32.gmra.mrb[0].mxu0 %v820
        %v891 = vpop.f32.mrb[0].mxu0
        %v892 = vadd.f32 0.0, %v891
        %v893 = vpop.f32.mrb[0].mxu0
        %894 = vmatprep.mubr.f32.mxu0 0.0
        %895 = vmatmul.mubr.f32.gmra.mrb[0].mxu0 %v823
        %v896 = vpop.f32.mrb[0].mxu0
        %v897 = vadd.f32 0.0, %v896
        %v898 = vpop.f32.mrb[0].mxu0
        %899 = vdwg.mxu0
        %v901 = vsel %vm314, %v892, 0
        %v904 = vsel %vm314, %v897, 0
        %906 = vmatprep.subr.mxu0 0.0
        %907 = vmatpush1.msra.mxu0 %v811
        %908 = vmatprep.subr.mxu0 0.0
        %909 = vmatpush1.msra.mxu0 %v812
        %910 = vmatprep.subr.mxu0 0.0
        %911 = vmatpush1.msra.mxu0 0.0
        %912 = vmatprep.subr.mxu0 0.0
        %913 = vmatpush1.msra.mxu0 0.0
        %914 = vmatprep.subr.mxu0 0.0
        %915 = vmatpush1.msra.mxu0 0.0
        %916 = vmatprep.subr.mxu0 0.0
        %917 = vmatpush1.msra.mxu0 0.0
        %918 = vmatprep.subr.mxu0 0.0
        %919 = vmatpush1.msra.mxu0 0.0
        %920 = vmatprep.subr.mxu0 0.0
        %921 = vmatpush1.msra.mxu0 0.0
        %922 = vmatprep.subr.mxu0 0.0
        %923 = vmatpush1.msra.mxu0 0.0
        %924 = vmatprep.subr.mxu0 0.0
        %925 = vmatpush1.msra.mxu0 0.0
        %926 = vmatprep.subr.mxu0 0.0
        %927 = vmatpush1.msra.mxu0 0.0
        %928 = vmatprep.subr.mxu0 0.0
        %929 = vmatpush1.msra.mxu0 0.0
        %930 = vmatprep.subr.mxu0 0.0
        %931 = vmatpush1.msra.mxu0 0.0
        %932 = vmatprep.subr.mxu0 0.0
        %933 = vmatpush1.msra.mxu0 0.0
        %934 = vmatprep.subr.mxu0 0.0
        %935 = vmatpush1.msra.mxu0 0.0
        %936 = vmatprep.subr.mxu0 0.0
        %937 = vmatpush1.msra.mxu0 0.0
        %938 = vmatprep.subr.mxu0 0.0
        %939 = vmatpush1.msra.mxu0 0.0
        %940 = vmatprep.subr.mxu0 0.0
        %941 = vmatpush1.msra.mxu0 0.0
        %942 = vmatprep.subr.mxu0 0.0
        %943 = vmatpush1.msra.mxu0 0.0
        %944 = vmatprep.subr.mxu0 0.0
        %945 = vmatpush1.msra.mxu0 0.0
        %946 = vmatprep.subr.mxu0 0.0
        %947 = vmatpush1.msra.mxu0 0.0
        %948 = vmatprep.subr.mxu0 0.0
        %949 = vmatpush1.msra.mxu0 0.0
        %950 = vmatprep.subr.mxu0 0.0
        %951 = vmatpush1.msra.mxu0 0.0
        %952 = vmatprep.subr.mxu0 0.0
        %953 = vmatpush1.msra.mxu0 0.0
        %954 = vmatprep.subr.mxu0 0.0
        %955 = vmatpush1.msra.mxu0 0.0
        %956 = vmatprep.subr.mxu0 0.0
        %957 = vmatpush1.msra.mxu0 0.0
        %958 = vmatprep.subr.mxu0 0.0
        %959 = vmatpush1.msra.mxu0 0.0
        %960 = vmatprep.subr.mxu0 0.0
        %961 = vmatpush1.msra.mxu0 0.0
        %962 = vmatprep.subr.mxu0 0.0
        %963 = vmatpush1.msra.mxu0 0.0
        %964 = vmatprep.subr.mxu0 0.0
        %965 = vmatpush1.msra.mxu0 0.0
        %966 = vmatprep.subr.mxu0 0.0
        %967 = vmatpush1.msra.mxu0 0.0
        %968 = vmatprep.subr.mxu0 0.0
        %969 = vmatpush1.msra.mxu0 0.0
        %970 = vmatprep.mubr.f32.mxu0 0.0
        %971 = vmatmul.mubr.f32.gmra.mrb[0].mxu0 %v901
        %v972 = vpop.f32.mrb[0].mxu0
        %v973 = vadd.f32 0.0, %v972
        %v974 = vpop.f32.mrb[0].mxu0
        %975 = vmatprep.mubr.f32.mxu0 0.0
        %976 = vmatmul.mubr.f32.gmra.mrb[0].mxu0 %v904
        %v977 = vpop.f32.mrb[0].mxu0
        %v978 = vadd.f32 0.0, %v977
        %v979 = vpop.f32.mrb[0].mxu0
        %980 = vdwg.mxu0
        %v982 = vsel %vm314, %v973, 0
        %v985 = vsel %vm314, %v978, 0
        %987 = vmatprep.subr.mxu0 0.0
        %988 = vmatpush1.msra.mxu0 %v817
        %989 = vmatprep.subr.mxu0 0.0
        %990 = vmatpush1.msra.mxu0 %v818
        %991 = vmatprep.subr.mxu0 0.0
        %992 = vmatpush1.msra.mxu0 0.0
        %993 = vmatprep.subr.mxu0 0.0
        %994 = vmatpush1.msra.mxu0 0.0
        %995 = vmatprep.subr.mxu0 0.0
        %996 = vmatpush1.msra.mxu0 0.0
        %997 = vmatprep.subr.mxu0 0.0
        %998 = vmatpush1.msra.mxu0 0.0
        %999 = vmatprep.subr.mxu0 0.0
        %1000 = vmatpush1.msra.mxu0 0.0
        %1001 = vmatprep.subr.mxu0 0.0
        %1002 = vmatpush1.msra.mxu0 0.0
        %1003 = vmatprep.subr.mxu0 0.0
        %1004 = vmatpush1.msra.mxu0 0.0
        %1005 = vmatprep.subr.mxu0 0.0
        %1006 = vmatpush1.msra.mxu0 0.0
        %1007 = vmatprep.subr.mxu0 0.0
        %1008 = vmatpush1.msra.mxu0 0.0
        %1009 = vmatprep.subr.mxu0 0.0
        %1010 = vmatpush1.msra.mxu0 0.0
        %1011 = vmatprep.subr.mxu0 0.0
        %1012 = vmatpush1.msra.mxu0 0.0
        %1013 = vmatprep.subr.mxu0 0.0
        %1014 = vmatpush1.msra.mxu0 0.0
        %1015 = vmatprep.subr.mxu0 0.0
        %1016 = vmatpush1.msra.mxu0 0.0
        %1017 = vmatprep.subr.mxu0 0.0
        %1018 = vmatpush1.msra.mxu0 0.0
        %1019 = vmatprep.subr.mxu0 0.0
        %1020 = vmatpush1.msra.mxu0 0.0
        %1021 = vmatprep.subr.mxu0 0.0
        %1022 = vmatpush1.msra.mxu0 0.0
        %1023 = vmatprep.subr.mxu0 0.0
        %1024 = vmatpush1.msra.mxu0 0.0
        %1025 = vmatprep.subr.mxu0 0.0
        %1026 = vmatpush1.msra.mxu0 0.0
        %1027 = vmatprep.subr.mxu0 0.0
        %1028 = vmatpush1.msra.mxu0 0.0
        %1029 = vmatprep.subr.mxu0 0.0
        %1030 = vmatpush1.msra.mxu0 0.0
        %1031 = vmatprep.subr.mxu0 0.0
        %1032 = vmatpush1.msra.mxu0 0.0
        %1033 = vmatprep.subr.mxu0 0.0
        %1034 = vmatpush1.msra.mxu0 0.0
        %1035 = vmatprep.subr.mxu0 0.0
        %1036 = vmatpush1.msra.mxu0 0.0
        %1037 = vmatprep.subr.mxu0 0.0
        %1038 = vmatpush1.msra.mxu0 0.0
        %1039 = vmatprep.subr.mxu0 0.0
        %1040 = vmatpush1.msra.mxu0 0.0
        %1041 = vmatprep.subr.mxu0 0.0
        %1042 = vmatpush1.msra.mxu0 0.0
        %1043 = vmatprep.subr.mxu0 0.0
        %1044 = vmatpush1.msra.mxu0 0.0
        %1045 = vmatprep.subr.mxu0 0.0
        %1046 = vmatpush1.msra.mxu0 0.0
        %1047 = vmatprep.subr.mxu0 0.0
        %1048 = vmatpush1.msra.mxu0 0.0
        %1049 = vmatprep.subr.mxu0 0.0
        %1050 = vmatpush1.msra.mxu0 0.0
        %1051 = vmatprep.mubr.f32.mxu0 0.0
        %1052 = vmatmul.mubr.f32.gmra.mrb[0].mxu0 %v982
        %v1053 = vpop.f32.mrb[0].mxu0
        %v1054 = vadd.f32 0.0, %v1053
        %v1055 = vpop.f32.mrb[0].mxu0
        %1056 = vmatprep.mubr.f32.mxu0 0.0
        %1057 = vmatmul.mubr.f32.gmra.mrb[0].mxu0 %v985
        %v1058 = vpop.f32.mrb[0].mxu0
        %v1059 = vadd.f32 0.0, %v1058
        %v1060 = vpop.f32.mrb[0].mxu0
        %1061 = vdwg.mxu0
        %s1062 = scalar_lea.vmem %s251, 48 [#allocation2]
        %v1063 = vld [vmem:[%s1062] sm:$0xff]
        %v1064 = vld [vmem:[%s1062 + $0x8] sm:$0xff]
        %s1065 = scalar_lea.vmem %s260, 48 [#allocation5]
        %v1066 = vld [vmem:[%s1065] sm:$0xff]
        %v1067 = vld [vmem:[%s1065 + $0x8] sm:$0xff]
        %s1068 = scalar_lea.vmem %s269, 48 [#allocation7]
        %v1069 = vld [vmem:[%s1068] sm:$0xff]
        %v1070 = vld [vmem:[%s1068 + $0x8] sm:$0xff]
        %v1072 = vsel %vm314, %v1063, 0
        %v1075 = vsel %vm314, %v1064, 0
        %1077 = vmatprep.subr.mxu0 0.0
        %1078 = vmatpush1.msra.mxu0 %v1066
        %1079 = vmatprep.subr.mxu0 0.0
        %1080 = vmatpush1.msra.mxu0 %v1067
        %1081 = vmatprep.subr.mxu0 0.0
        %1082 = vmatpush1.msra.mxu0 0.0
        %1083 = vmatprep.subr.mxu0 0.0
        %1084 = vmatpush1.msra.mxu0 0.0
        %1085 = vmatprep.subr.mxu0 0.0
        %1086 = vmatpush1.msra.mxu0 0.0
        %1087 = vmatprep.subr.mxu0 0.0
        %1088 = vmatpush1.msra.mxu0 0.0
        %1089 = vmatprep.subr.mxu0 0.0
        %1090 = vmatpush1.msra.mxu0 0.0
        %1091 = vmatprep.subr.mxu0 0.0
        %1092 = vmatpush1.msra.mxu0 0.0
        %1093 = vmatprep.subr.mxu0 0.0
        %1094 = vmatpush1.msra.mxu0 0.0
        %1095 = vmatprep.subr.mxu0 0.0
        %1096 = vmatpush1.msra.mxu0 0.0
        %1097 = vmatprep.subr.mxu0 0.0
        %1098 = vmatpush1.msra.mxu0 0.0
        %1099 = vmatprep.subr.mxu0 0.0
        %1100 = vmatpush1.msra.mxu0 0.0
        %1101 = vmatprep.subr.mxu0 0.0
        %1102 = vmatpush1.msra.mxu0 0.0
        %1103 = vmatprep.subr.mxu0 0.0
        %1104 = vmatpush1.msra.mxu0 0.0
        %1105 = vmatprep.subr.mxu0 0.0
        %1106 = vmatpush1.msra.mxu0 0.0
        %1107 = vmatprep.subr.mxu0 0.0
        %1108 = vmatpush1.msra.mxu0 0.0
        %1109 = vmatprep.subr.mxu0 0.0
        %1110 = vmatpush1.msra.mxu0 0.0
        %1111 = vmatprep.subr.mxu0 0.0
        %1112 = vmatpush1.msra.mxu0 0.0
        %1113 = vmatprep.subr.mxu0 0.0
        %1114 = vmatpush1.msra.mxu0 0.0
        %1115 = vmatprep.subr.mxu0 0.0
        %1116 = vmatpush1.msra.mxu0 0.0
        %1117 = vmatprep.subr.mxu0 0.0
        %1118 = vmatpush1.msra.mxu0 0.0
        %1119 = vmatprep.subr.mxu0 0.0
        %1120 = vmatpush1.msra.mxu0 0.0
        %1121 = vmatprep.subr.mxu0 0.0
        %1122 = vmatpush1.msra.mxu0 0.0
        %1123 = vmatprep.subr.mxu0 0.0
        %1124 = vmatpush1.msra.mxu0 0.0
        %1125 = vmatprep.subr.mxu0 0.0
        %1126 = vmatpush1.msra.mxu0 0.0
        %1127 = vmatprep.subr.mxu0 0.0
        %1128 = vmatpush1.msra.mxu0 0.0
        %1129 = vmatprep.subr.mxu0 0.0
        %1130 = vmatpush1.msra.mxu0 0.0
        %1131 = vmatprep.subr.mxu0 0.0
        %1132 = vmatpush1.msra.mxu0 0.0
        %1133 = vmatprep.subr.mxu0 0.0
        %1134 = vmatpush1.msra.mxu0 0.0
        %1135 = vmatprep.subr.mxu0 0.0
        %1136 = vmatpush1.msra.mxu0 0.0
        %1137 = vmatprep.subr.mxu0 0.0
        %1138 = vmatpush1.msra.mxu0 0.0
        %1139 = vmatprep.subr.mxu0 0.0
        %1140 = vmatpush1.msra.mxu0 0.0
        %1141 = vmatprep.mubr.f32.mxu0 0.0
        %1142 = vmatmul.mubr.f32.gmra.mrb[0].mxu0 %v1072
        %v1143 = vpop.f32.mrb[0].mxu0
        %v1144 = vadd.f32 0.0, %v1143
        %v1145 = vpop.f32.mrb[0].mxu0
        %1146 = vmatprep.mubr.f32.mxu0 0.0
        %1147 = vmatmul.mubr.f32.gmra.mrb[0].mxu0 %v1075
        %v1148 = vpop.f32.mrb[0].mxu0
        %v1149 = vadd.f32 0.0, %v1148
        %v1150 = vpop.f32.mrb[0].mxu0
        %1151 = vdwg.mxu0
        %v1153 = vsel %vm314, %v1144, 0
        %v1156 = vsel %vm314, %v1149, 0
        %1158 = vmatprep.subr.mxu0 0.0
        %1159 = vmatpush1.msra.mxu0 %v1063
        %1160 = vmatprep.subr.mxu0 0.0
        %1161 = vmatpush1.msra.mxu0 %v1064
        %1162 = vmatprep.subr.mxu0 0.0
        %1163 = vmatpush1.msra.mxu0 0.0
        %1164 = vmatprep.subr.mxu0 0.0
        %1165 = vmatpush1.msra.mxu0 0.0
        %1166 = vmatprep.subr.mxu0 0.0
        %1167 = vmatpush1.msra.mxu0 0.0
        %1168 = vmatprep.subr.mxu0 0.0
        %1169 = vmatpush1.msra.mxu0 0.0
        %1170 = vmatprep.subr.mxu0 0.0
        %1171 = vmatpush1.msra.mxu0 0.0
        %1172 = vmatprep.subr.mxu0 0.0
        %1173 = vmatpush1.msra.mxu0 0.0
        %1174 = vmatprep.subr.mxu0 0.0
        %1175 = vmatpush1.msra.mxu0 0.0
        %1176 = vmatprep.subr.mxu0 0.0
        %1177 = vmatpush1.msra.mxu0 0.0
        %1178 = vmatprep.subr.mxu0 0.0
        %1179 = vmatpush1.msra.mxu0 0.0
        %1180 = vmatprep.subr.mxu0 0.0
        %1181 = vmatpush1.msra.mxu0 0.0
        %1182 = vmatprep.subr.mxu0 0.0
        %1183 = vmatpush1.msra.mxu0 0.0
        %1184 = vmatprep.subr.mxu0 0.0
        %1185 = vmatpush1.msra.mxu0 0.0
        %1186 = vmatprep.subr.mxu0 0.0
        %1187 = vmatpush1.msra.mxu0 0.0
        %1188 = vmatprep.subr.mxu0 0.0
        %1189 = vmatpush1.msra.mxu0 0.0
        %1190 = vmatprep.subr.mxu0 0.0
        %1191 = vmatpush1.msra.mxu0 0.0
        %1192 = vmatprep.subr.mxu0 0.0
        %1193 = vmatpush1.msra.mxu0 0.0
        %1194 = vmatprep.subr.mxu0 0.0
        %1195 = vmatpush1.msra.mxu0 0.0
        %1196 = vmatprep.subr.mxu0 0.0
        %1197 = vmatpush1.msra.mxu0 0.0
        %1198 = vmatprep.subr.mxu0 0.0
        %1199 = vmatpush1.msra.mxu0 0.0
        %1200 = vmatprep.subr.mxu0 0.0
        %1201 = vmatpush1.msra.mxu0 0.0
        %1202 = vmatprep.subr.mxu0 0.0
        %1203 = vmatpush1.msra.mxu0 0.0
        %1204 = vmatprep.subr.mxu0 0.0
        %1205 = vmatpush1.msra.mxu0 0.0
        %1206 = vmatprep.subr.mxu0 0.0
        %1207 = vmatpush1.msra.mxu0 0.0
        %1208 = vmatprep.subr.mxu0 0.0
        %1209 = vmatpush1.msra.mxu0 0.0
        %1210 = vmatprep.subr.mxu0 0.0
        %1211 = vmatpush1.msra.mxu0 0.0
        %1212 = vmatprep.subr.mxu0 0.0
        %1213 = vmatpush1.msra.mxu0 0.0
        %1214 = vmatprep.subr.mxu0 0.0
        %1215 = vmatpush1.msra.mxu0 0.0
        %1216 = vmatprep.subr.mxu0 0.0
        %1217 = vmatpush1.msra.mxu0 0.0
        %1218 = vmatprep.subr.mxu0 0.0
        %1219 = vmatpush1.msra.mxu0 0.0
        %1220 = vmatprep.subr.mxu0 0.0
        %1221 = vmatpush1.msra.mxu0 0.0
        %1222 = vmatprep.mubr.f32.mxu0 0.0
        %1223 = vmatmul.mubr.f32.gmra.mrb[0].mxu0 %v1153
        %v1224 = vpop.f32.mrb[0].mxu0
        %v1225 = vadd.f32 0.0, %v1224
        %v1226 = vpop.f32.mrb[0].mxu0
        %1227 = vmatprep.mubr.f32.mxu0 0.0
        %1228 = vmatmul.mubr.f32.gmra.mrb[0].mxu0 %v1156
        %v1229 = vpop.f32.mrb[0].mxu0
        %v1230 = vadd.f32 0.0, %v1229
        %v1231 = vpop.f32.mrb[0].mxu0
        %1232 = vdwg.mxu0
        %v1234 = vsel %vm314, %v1225, 0
        %v1237 = vsel %vm314, %v1230, 0
        %1239 = vmatprep.subr.mxu0 0.0
        %1240 = vmatpush1.msra.mxu0 %v1069
        %1241 = vmatprep.subr.mxu0 0.0
        %1242 = vmatpush1.msra.mxu0 %v1070
        %1243 = vmatprep.subr.mxu0 0.0
        %1244 = vmatpush1.msra.mxu0 0.0
        %1245 = vmatprep.subr.mxu0 0.0
        %1246 = vmatpush1.msra.mxu0 0.0
        %1247 = vmatprep.subr.mxu0 0.0
        %1248 = vmatpush1.msra.mxu0 0.0
        %1249 = vmatprep.subr.mxu0 0.0
        %1250 = vmatpush1.msra.mxu0 0.0
        %1251 = vmatprep.subr.mxu0 0.0
        %1252 = vmatpush1.msra.mxu0 0.0
        %1253 = vmatprep.subr.mxu0 0.0
        %1254 = vmatpush1.msra.mxu0 0.0
        %1255 = vmatprep.subr.mxu0 0.0
        %1256 = vmatpush1.msra.mxu0 0.0
        %1257 = vmatprep.subr.mxu0 0.0
        %1258 = vmatpush1.msra.mxu0 0.0
        %1259 = vmatprep.subr.mxu0 0.0
        %1260 = vmatpush1.msra.mxu0 0.0
        %1261 = vmatprep.subr.mxu0 0.0
        %1262 = vmatpush1.msra.mxu0 0.0
        %1263 = vmatprep.subr.mxu0 0.0
        %1264 = vmatpush1.msra.mxu0 0.0
        %1265 = vmatprep.subr.mxu0 0.0
        %1266 = vmatpush1.msra.mxu0 0.0
        %1267 = vmatprep.subr.mxu0 0.0
        %1268 = vmatpush1.msra.mxu0 0.0
        %1269 = vmatprep.subr.mxu0 0.0
        %1270 = vmatpush1.msra.mxu0 0.0
        %1271 = vmatprep.subr.mxu0 0.0
        %1272 = vmatpush1.msra.mxu0 0.0
        %1273 = vmatprep.subr.mxu0 0.0
        %1274 = vmatpush1.msra.mxu0 0.0
        %1275 = vmatprep.subr.mxu0 0.0
        %1276 = vmatpush1.msra.mxu0 0.0
        %1277 = vmatprep.subr.mxu0 0.0
        %1278 = vmatpush1.msra.mxu0 0.0
        %1279 = vmatprep.subr.mxu0 0.0
        %1280 = vmatpush1.msra.mxu0 0.0
        %1281 = vmatprep.subr.mxu0 0.0
        %1282 = vmatpush1.msra.mxu0 0.0
        %1283 = vmatprep.subr.mxu0 0.0
        %1284 = vmatpush1.msra.mxu0 0.0
        %1285 = vmatprep.subr.mxu0 0.0
        %1286 = vmatpush1.msra.mxu0 0.0
        %1287 = vmatprep.subr.mxu0 0.0
        %1288 = vmatpush1.msra.mxu0 0.0
        %1289 = vmatprep.subr.mxu0 0.0
        %1290 = vmatpush1.msra.mxu0 0.0
        %1291 = vmatprep.subr.mxu0 0.0
        %1292 = vmatpush1.msra.mxu0 0.0
        %1293 = vmatprep.subr.mxu0 0.0
        %1294 = vmatpush1.msra.mxu0 0.0
        %1295 = vmatprep.subr.mxu0 0.0
        %1296 = vmatpush1.msra.mxu0 0.0
        %1297 = vmatprep.subr.mxu0 0.0
        %1298 = vmatpush1.msra.mxu0 0.0
        %1299 = vmatprep.subr.mxu0 0.0
        %1300 = vmatpush1.msra.mxu0 0.0
        %1301 = vmatprep.subr.mxu0 0.0
        %1302 = vmatpush1.msra.mxu0 0.0
        %1303 = vmatprep.mubr.f32.mxu0 0.0
        %1304 = vmatmul.mubr.f32.gmra.mrb[0].mxu0 %v1234
        %v1305 = vpop.f32.mrb[0].mxu0
        %v1306 = vadd.f32 0.0, %v1305
        %v1307 = vpop.f32.mrb[0].mxu0
        %1308 = vmatprep.mubr.f32.mxu0 0.0
        %1309 = vmatmul.mubr.f32.gmra.mrb[0].mxu0 %v1237
        %v1310 = vpop.f32.mrb[0].mxu0
        %v1311 = vadd.f32 0.0, %v1310
        %v1312 = vpop.f32.mrb[0].mxu0
        %1313 = vdwg.mxu0
        %1316 = vrot.lane.b32.xlu0 %v802, 32
        %v1317 = vpop.permute.xlu0 %1316
        %1318 = vrot.lane.b32.xlu0 %v807, 32
        %v1319 = vpop.permute.xlu0 %1318
        %1324 = vrot.lane.b32.xlu0 %v1054, 64
        %v1325 = vpop.permute.xlu0 %1324
        %1326 = vrot.lane.b32.xlu0 %v1059, 64
        %v1327 = vpop.permute.xlu0 %1326
        %1332 = vrot.lane.b32.xlu0 %v1306, 96
        %v1333 = vpop.permute.xlu0 %1332
        %1334 = vrot.lane.b32.xlu0 %v1311, 96
        %v1335 = vpop.permute.xlu0 %1334
        %vm1338 = vcmask 261120
        %v1339 = vsel %vm1338, %v550, %v1317
        %v1340 = vsel %vm1338, %v555, %v1319
        %vm1341 = vcmask 523264
        %v1342 = vsel %vm1341, %v1339, %v1325
        %v1343 = vsel %vm1341, %v1340, %v1327
        %vm1344 = vcmask 785408
        %v1345 = vsel %vm1344, %v1342, %v1333
        %v1346 = vsel %vm1344, %v1343, %v1335
        %v1347 = vld [vmem:[#allocation8] sm:$0xff]
        %v1348 = vld [vmem:[#allocation8 + $0x8] sm:$0xff]
        %v1349 = vld [vmem:[#allocation8 + $0x10] sm:$0xff]
        %v1350 = vld [vmem:[#allocation8 + $0x18] sm:$0xff]
        %v1351 = vld [vmem:[#allocation8 + $0x20] sm:$0xff]
        %v1352 = vld [vmem:[#allocation8 + $0x28] sm:$0xff]
        %v1353 = vld [vmem:[#allocation8 + $0x30] sm:$0xff]
        %v1354 = vld [vmem:[#allocation8 + $0x38] sm:$0xff]
        %v1355 = vld [vmem:[#allocation8 + $0x40] sm:$0xff]
        %v1356 = vld [vmem:[#allocation8 + $0x48] sm:$0xff]
        %v1357 = vld [vmem:[#allocation8 + $0x50] sm:$0xff]
        %v1358 = vld [vmem:[#allocation8 + $0x58] sm:$0xff]
        %v1359 = vld [vmem:[#allocation8 + $0x60] sm:$0xff]
        %v1360 = vld [vmem:[#allocation8 + $0x68] sm:$0xff]
        %v1361 = vld [vmem:[#allocation8 + $0x70] sm:$0xff]
        %v1362 = vld [vmem:[#allocation8 + $0x78] sm:$0xff]
        %1363 = vmatprep.subr.mxu0 0.0
        %1364 = vmatpush1.msra.mxu0 %v1347
        %1365 = vmatprep.subr.mxu0 0.0
        %1366 = vmatpush1.msra.mxu0 %v1348
        %1367 = vmatprep.subr.mxu0 0.0
        %1368 = vmatpush1.msra.mxu0 %v1349
        %1369 = vmatprep.subr.mxu0 0.0
        %1370 = vmatpush1.msra.mxu0 %v1350
        %1371 = vmatprep.subr.mxu0 0.0
        %1372 = vmatpush1.msra.mxu0 %v1351
        %1373 = vmatprep.subr.mxu0 0.0
        %1374 = vmatpush1.msra.mxu0 %v1352
        %1375 = vmatprep.subr.mxu0 0.0
        %1376 = vmatpush1.msra.mxu0 %v1353
        %1377 = vmatprep.subr.mxu0 0.0
        %1378 = vmatpush1.msra.mxu0 %v1354
        %1379 = vmatprep.subr.mxu0 0.0
        %1380 = vmatpush1.msra.mxu0 %v1355
        %1381 = vmatprep.subr.mxu0 0.0
        %1382 = vmatpush1.msra.mxu0 %v1356
        %1383 = vmatprep.subr.mxu0 0.0
        %1384 = vmatpush1.msra.mxu0 %v1357
        %1385 = vmatprep.subr.mxu0 0.0
        %1386 = vmatpush1.msra.mxu0 %v1358
        %1387 = vmatprep.subr.mxu0 0.0
        %1388 = vmatpush1.msra.mxu0 %v1359
        %1389 = vmatprep.subr.mxu0 0.0
        %1390 = vmatpush1.msra.mxu0 %v1360
        %1391 = vmatprep.subr.mxu0 0.0
        %1392 = vmatpush1.msra.mxu0 %v1361
        %1393 = vmatprep.subr.mxu0 0.0
        %1394 = vmatpush1.msra.mxu0 %v1362
        %1395 = vmatprep.subr.mxu0 0.0
        %1396 = vmatpush1.msra.mxu0 0.0
        %1397 = vmatprep.subr.mxu0 0.0
        %1398 = vmatpush1.msra.mxu0 0.0
        %1399 = vmatprep.subr.mxu0 0.0
        %1400 = vmatpush1.msra.mxu0 0.0
        %1401 = vmatprep.subr.mxu0 0.0
        %1402 = vmatpush1.msra.mxu0 0.0
        %1403 = vmatprep.subr.mxu0 0.0
        %1404 = vmatpush1.msra.mxu0 0.0
        %1405 = vmatprep.subr.mxu0 0.0
        %1406 = vmatpush1.msra.mxu0 0.0
        %1407 = vmatprep.subr.mxu0 0.0
        %1408 = vmatpush1.msra.mxu0 0.0
        %1409 = vmatprep.subr.mxu0 0.0
        %1410 = vmatpush1.msra.mxu0 0.0
        %1411 = vmatprep.subr.mxu0 0.0
        %1412 = vmatpush1.msra.mxu0 0.0
        %1413 = vmatprep.subr.mxu0 0.0
        %1414 = vmatpush1.msra.mxu0 0.0
        %1415 = vmatprep.subr.mxu0 0.0
        %1416 = vmatpush1.msra.mxu0 0.0
        %1417 = vmatprep.subr.mxu0 0.0
        %1418 = vmatpush1.msra.mxu0 0.0
        %1419 = vmatprep.subr.mxu0 0.0
        %1420 = vmatpush1.msra.mxu0 0.0
        %1421 = vmatprep.subr.mxu0 0.0
        %1422 = vmatpush1.msra.mxu0 0.0
        %1423 = vmatprep.subr.mxu0 0.0
        %1424 = vmatpush1.msra.mxu0 0.0
        %1425 = vmatprep.subr.mxu0 0.0
        %1426 = vmatpush1.msra.mxu0 0.0
        %1427 = vmatprep.mubr.f32.mxu0 0.0
        %1428 = vmatmul.mubr.f32.gmra.mrb[0].mxu0 %v1345
        %v1429 = vpop.f32.mrb[0].mxu0
        %v1430 = vadd.f32 0.0, %v1429
        %v1431 = vpop.f32.mrb[0].mxu0
        %1432 = vmatprep.mubr.f32.mxu0 0.0
        %1433 = vmatmul.mubr.f32.gmra.mrb[0].mxu0 %v1346
        %v1434 = vpop.f32.mrb[0].mxu0
        %v1435 = vadd.f32 0.0, %v1434
        %v1436 = vpop.f32.mrb[0].mxu0
        %1437 = vdwg.mxu0
        %v1438 = vmax.f32 %v1430, 0.0
        %v1439 = vmax.f32 %v1435, 0.0
        %1440 = vst [vmem:[%s307] sm:$0xff] %v1438
        %1441 = vst [vmem:[%s307 + $0x8] sm:$0xff] %v1439
        %s1442 = sand.u32 %s132, 1
        %s1443 = scalar_lea.sflag [#allocation4], %s1442
        %s1444 = sand.u32 %s132, 1
        %s1445 = smul.addr %s1444, 16
        %s1446 = scalar_lea.vmem [#allocation10], %s1445
        // Predicated region
        $region53: #{tpu_custom_call.1} parent=35 // pred_check
          %p1447 = pneg %p142
        $region54: #{tpu_custom_call.1} parent=35 // pred_check_branch
          %1449 = sbr.rel (%p1447) target = $region56
        $region55: #{tpu_custom_call.1} parent=35 // pred_region
          %s1451 = ssub.s32 256, 256
          %1452 = vsyncadd %s1443, %s1451
          %s1453 = smul.addr %s25, 2
          %s1454 = smul.addr %s1453, 128
          %s1455 = scalar_lea.hbm %s4, %s1454
          %s1456 = sshll.u32 %s1446, 4
          %s1457 = int_to_ptr.vmem [resolvable:$true] %s1456
          %1462 = dma.vmem_to_hbm [thread:$0]  %s1457, 256, %s1455, %s1443, 128, 128, 8
        $region56: #{tpu_custom_call.1} parent=35 // pred_fallthru
          _
      $region36: #{tpu_custom_call.1} parent=5 // pred_fallthru
        _
      %p1463 = scmp.le.s32.totalorder 2, %s20
      // Predicated region
      $region57: #{tpu_custom_call.1} parent=5 // pred_check
        %p1464 = pneg %p1463
      $region58: #{tpu_custom_call.1} parent=5 // pred_check_branch
        %1466 = sbr.rel (%p1464) target = $region60
      $region59: #{tpu_custom_call.1} parent=5 // pred_region
        %s1467 = ssub.s32 %s20, 2
        // Predicated region
        $region61: #{tpu_custom_call.1} parent=59 // pred_check
          %p1468 = pneg %p148
        $region62: #{tpu_custom_call.1} parent=59 // pred_check_branch
          %1470 = sbr.rel (%p1468) target = $region64
        $region63: #{tpu_custom_call.1} parent=59 // pred_region
          %s1471 = sand.u32 %s133, 1
          %s1472 = scalar_lea.sflag [#allocation4], %s1471
          %s1473 = sand.u32 %s133, 1
          %s1474 = smul.addr %s1473, 16
          %s1475 = scalar_lea.vmem [#allocation10], %s1474
          %1476 = dma.done %s1472, 256
        $region64: #{tpu_custom_call.1} parent=59 // pred_fallthru
          _
      $region60: #{tpu_custom_call.1} parent=5 // pred_fallthru
        _
    $region6: #{tpu_custom_call.1} parent=1 // loop_footer
      %s24 = sadd.s32 1, %s20
    $region7: #{tpu_custom_call.1} parent=1 // loop_footer_branch
      %19 = sbr.rel target = $region3
    $region8: #{tpu_custom_call.1} parent=1 // loop_exit
      _
    %1477 = vsyncpa [#allocation3], 1
    %s1478 = scalar_lea.sflag [#allocation3], 1
    %1479 = vsyncpa %s1478, 1
    %1480 = vsyncpa [#allocation6], 1
    %s1481 = scalar_lea.sflag [#allocation6], 1
    %1482 = vsyncpa %s1481, 1
    %1483 = vsyncpa [#allocation9], 1
    %1484 = vsyncpa [#allocation4], 1
    %s1485 = scalar_lea.sflag [#allocation4], 1
    %1486 = vsyncpa %s1485, 1

</llo_original>
